<compile_context>
chip_gen: v7x
topology: tpu7x:2x2x1
jax: 0.10.0
libtpu: 0.0.40
codegen_flags: <defaults>
</compile_context>

<pallas_src>
import functools

import jax
import jax.numpy as jnp
from jax.experimental import pallas as pl
from jax.experimental.pallas import tpu as pltpu

BN_EPS = 1e-5


# ----------------------------- Pallas kernel ------------------------------- #
def _double_coordconv_kernel(H, x_ref, w1_ref, b1_ref, w2_ref, b2_ref, o_ref,
                             xpad_ref, lhs1_ref, ypad_ref, lhs2_ref):
    """Fused (CoordConv3x3 + BN(eval) + ReLU) x 2 for a slab of Bt images.

    x_ref:    (M, W*Cin)   f32   M = Bt*H image rows, (w, ci) flattened in lanes
    w1_ref:   (3*W*Cin,  W*Cout) bf16  stage-1 banded weights (BN1 scale folded)
    b1_ref:   (M, W*Cout) f32    stage-1 coord-conv contribution + BN1 shift
    w2_ref:   (3*W*Cout, W*Cout) bf16  stage-2 banded weights (BN2 scale folded)
    b2_ref:   (M, W*Cout) f32
    o_ref:    (M, W*Cout) f32    lane-dense output rows
    xpad_ref: (M+2, W*Cin)  f32  scratch: x slab with a 1-row halo
    lhs1_ref: (M, 3*W*Cin)  bf16 scratch: [x[h-1] | x[h] | x[h+1]] per row
    ypad_ref: (M+2, W*Cout) f32  scratch: stage-1 activation with a 1-row halo
    lhs2_ref: (M, 3*W*Cout) bf16
    """
    M, Ko = o_ref.shape
    Ki = x_ref.shape[1]
    bf16 = jnp.bfloat16

    # Per-image row index: h == 0 rows have no row above, h == H-1 rows none
    # below.  The masks zero both the halo rows of the pad scratches and the
    # neighbouring rows of the *previous/next image* inside the batch slab.
    h = jax.lax.broadcasted_iota(jnp.int32, (M, 1), 0) % H
    not_top = h > 0
    not_bot = h < (H - 1)

    zi = jnp.zeros((1, Ki), jnp.float32)
    zo = jnp.zeros((1, Ko), jnp.float32)

    # ---------------- stage 1: conv1 + BN1(eval) + ReLU ----------------
    xs = x_ref[...]                                   # (M, W*Cin) f32
    xpad_ref[0:1, :] = zi                             # keep halo deterministic
    xpad_ref[M + 1:M + 2, :] = zi
    xpad_ref[1:M + 1, :] = xs
    lhs1_ref[:, 0:Ki] = jnp.where(not_top, xpad_ref[0:M, :], 0.0).astype(bf16)
    lhs1_ref[:, Ki:2 * Ki] = xs.astype(bf16)
    lhs1_ref[:, 2 * Ki:3 * Ki] = jnp.where(not_bot, xpad_ref[2:M + 2, :],
                                           0.0).astype(bf16)
    y1 = jnp.maximum(
        b1_ref[...] + jnp.dot(lhs1_ref[...], w1_ref[...],
                              preferred_element_type=jnp.float32), 0.0)

    # ---------------- stage 2: conv2 + BN2(eval) + ReLU ----------------
    ypad_ref[0:1, :] = zo
    ypad_ref[M + 1:M + 2, :] = zo
    ypad_ref[1:M + 1, :] = y1
    lhs2_ref[:, 0:Ko] = jnp.where(not_top, ypad_ref[0:M, :], 0.0).astype(bf16)
    lhs2_ref[:, Ko:2 * Ko] = y1.astype(bf16)
    lhs2_ref[:, 2 * Ko:3 * Ko] = jnp.where(not_bot, ypad_ref[2:M + 2, :],
                                           0.0).astype(bf16)
    o_ref[...] = jnp.maximum(
        b2_ref[...] + jnp.dot(lhs2_ref[...], w2_ref[...],
                              preferred_element_type=jnp.float32),
        0.0).astype(o_ref.dtype)


# ------------------------------- JAX glue ----------------------------------- #
def _coords_hw(H, W):
    """AddCoords(with_r=False) coordinate planes, faithful to the PyTorch code
    (xx = column index normalized by (x_dim-1)=H-1, yy = row index / (W-1))."""
    col = jnp.arange(W, dtype=jnp.float32)
    row = jnp.arange(H, dtype=jnp.float32)
    xx = jnp.broadcast_to(col[None, :], (H, W)) / (H - 1) * 2.0 - 1.0
    yy = jnp.broadcast_to(row[:, None], (H, W)) / (W - 1) * 2.0 - 1.0
    return jnp.stack([xx, yy], axis=-1)               # (H, W, 2)


def add_coords_nhwc(x):
    B, H, W, _ = x.shape
    c = jnp.broadcast_to(_coords_hw(H, W)[None], (B, H, W, 2))
    return jnp.concatenate([x, c], axis=-1)


def _band_weights(k_hwio, W):
    """(3, 3, C, Cout) HWIO kernel -> (3, W*C, W*Cout) row-banded matrices.

    band[dh, w'*C + ci, w*Cout + co] = k[dh, w'-w+1, ci, co] if |w'-w| <= 1
    else 0 — i.e. the width convolution (incl. zero width padding) as a matmul.
    """
    _, _, C, Cout = k_hwio.shape
    wp = jnp.arange(W)[:, None]
    w = jnp.arange(W)[None, :]
    dw = wp - w + 1                                    # (W, W)
    valid = ((dw >= 0) & (dw <= 2)).astype(k_hwio.dtype)
    kg = k_hwio[:, jnp.clip(dw, 0, 2), :, :]           # (3, W', W, C, Cout)
    kg = kg * valid[None, :, :, None, None]
    band = jnp.transpose(kg, (0, 1, 3, 2, 4))          # (3, W', C, W, Cout)
    return band.reshape(3, W * C, W * Cout)


def _coord_bias(k_coord_hwio, shift, H, W):
    """conv(coord channels) + BN shift, as a lane-dense (H, W*Cout) bias.
    Batch independent -> computed once in the wrapper, never re-done per image."""
    coords = _coords_hw(H, W)[None]                    # (1, H, W, 2)
    y = jax.lax.conv_general_dilated(
        coords, k_coord_hwio, (1, 1), ((1, 1), (1, 1)),
        dimension_numbers=("NHWC", "HWIO", "NHWC"))[0]  # (H, W, Cout)
    Cout = k_coord_hwio.shape[-1]
    return (y + shift[None, None, :]).reshape(H, W * Cout)


def _fold_bn(p):
    """Fold eval-mode BatchNorm into (scaled weights, shift) per stage."""
    s1 = p["g1"] / jnp.sqrt(p["v1"] + BN_EPS)
    t1 = p["b1"] - p["m1"] * s1
    s2 = p["g2"] / jnp.sqrt(p["v2"] + BN_EPS)
    t2 = p["b2"] - p["m2"] * s2
    return p["w1"] * s1, t1, p["w2"] * s2, t2


def _pick_images_per_step(B, H, max_rows=512):
    """Images folded into one grid step (matmul M = Bt*H rows).

    Largest divisor of B such that the row slab stays modest (<= max_rows) and,
    when B > 1, at least two grid steps remain so v7x's two TensorCores both
    work the 'parallel' batch axis.
    """
    best = 1
    for bt in range(1, B + 1):
        if B % bt:
            continue
        if bt * H > max_rows:
            continue
        if B > 1 and B // bt < 2:
            continue
        best = bt
    return best


@jax.jit
def double_conv_forward(x_nchw, p):
    """DoubleConv.forward. Input/output are NCHW like the PyTorch module."""
    B, Cin, H, W = x_nchw.shape
    w1f, t1, w2f, t2 = _fold_bn(p)
    Cout = w1f.shape[-1]

    Bt = _pick_images_per_step(B, H)
    G = B // Bt
    M = Bt * H

    # Banded weights (data channels only), 3 kernel rows concatenated along K,
    # cast to bf16 for single-pass MXU matmuls.  Coord channels + BN shift
    # become a per-row additive f32 bias map (tiled over the Bt images).
    wb1 = _band_weights(w1f[:, :, :Cin, :], W)
    wb1 = wb1.reshape(3 * W * Cin, W * Cout).astype(jnp.bfloat16)
    wb2 = _band_weights(w2f[:, :, :Cout, :], W)
    wb2 = wb2.reshape(3 * W * Cout, W * Cout).astype(jnp.bfloat16)
    bias1 = jnp.tile(_coord_bias(w1f[:, :, Cin:, :], t1, H, W), (Bt, 1))
    bias2 = jnp.tile(_coord_bias(w2f[:, :, Cout:, :], t2, H, W), (Bt, 1))

    # NCHW -> NHWC -> (B*H, W*Cin) row slab; contiguous reshape, no relayout.
    x = jnp.transpose(x_nchw, (0, 2, 3, 1)).astype(jnp.float32)
    x = x.reshape(B * H, W * Cin)

    out_flat = pl.pallas_call(
        functools.partial(_double_coordconv_kernel, H),
        out_shape=jax.ShapeDtypeStruct((B * H, W * Cout), jnp.float32),
        grid=(G,),
        in_specs=[
            pl.BlockSpec((M, W * Cin), lambda g: (g, 0)),
            pl.BlockSpec((3 * W * Cin, W * Cout), lambda g: (0, 0)),
            pl.BlockSpec((M, W * Cout), lambda g: (0, 0)),
            pl.BlockSpec((3 * W * Cout, W * Cout), lambda g: (0, 0)),
            pl.BlockSpec((M, W * Cout), lambda g: (0, 0)),
        ],
        out_specs=pl.BlockSpec((M, W * Cout), lambda g: (g, 0)),
        scratch_shapes=[
            pltpu.VMEM((M + 2, W * Cin), jnp.float32),
            pltpu.VMEM((M, 3 * W * Cin), jnp.bfloat16),
            pltpu.VMEM((M + 2, W * Cout), jnp.float32),
            pltpu.VMEM((M, 3 * W * Cout), jnp.bfloat16),
        ],
        compiler_params=pltpu.CompilerParams(
            dimension_semantics=("parallel",)),
    )(x, wb1, bias1, wb2, bias2)

    out = out_flat.reshape(B, H, W, Cout)               # contiguous un-flatten
    return jnp.transpose(out, (0, 3, 1, 2))              # NHWC -> NCHW


def init_params(key, in_ch, out_ch):
    ks = jax.random.split(key, 10)
    # PyTorch Conv2d weights are OIHW: (out_ch, in_ch+2, 3, 3); stored as HWIO.
    w1 = 0.1 * jax.random.normal(ks[0], (out_ch, in_ch + 2, 3, 3), jnp.float32)
    w2 = 0.1 * jax.random.normal(ks[1], (out_ch, out_ch + 2, 3, 3), jnp.float32)
    return dict(
        w1=jnp.transpose(w1, (2, 3, 1, 0)),
        w2=jnp.transpose(w2, (2, 3, 1, 0)),
        g1=jax.random.uniform(ks[2], (out_ch,), jnp.float32, 0.5, 1.5),
        b1=0.1 * jax.random.normal(ks[3], (out_ch,), jnp.float32),
        m1=0.1 * jax.random.normal(ks[4], (out_ch,), jnp.float32),
        v1=jax.random.uniform(ks[5], (out_ch,), jnp.float32, 0.5, 1.5),
        g2=jax.random.uniform(ks[6], (out_ch,), jnp.float32, 0.5, 1.5),
        b2=0.1 * jax.random.normal(ks[7], (out_ch,), jnp.float32),
        m2=0.1 * jax.random.normal(ks[8], (out_ch,), jnp.float32),
        v2=jax.random.uniform(ks[9], (out_ch,), jnp.float32, 0.5, 1.5),
    )


# ------------------------ pure-JAX references (checks) ---------------------- #
def _ref_double_conv_folded(x_nchw, w1f, t1, w2f, t2):
    """Same eval-mode-BN-folded computation done with lax.conv in f32."""
    def stage(x, w, t):
        xc = add_coords_nhwc(x)
        y = jax.lax.conv_general_dilated(
            xc, w, (1, 1), ((1, 1), (1, 1)),
            dimension_numbers=("NHWC", "HWIO", "NHWC"))
        return jnp.maximum(y + t[None, None, None, :], 0.0)
    x = jnp.transpose(x_nchw, (0, 2, 3, 1)).astype(jnp.float32)
    y = stage(x, w1f, t1)
    y = stage(y, w2f, t2)
    return jnp.transpose(y, (0, 3, 1, 2))


def _ref_double_conv(x_nchw, p):
    """Literal CoordConv -> BN(eval) -> ReLU (twice) reference."""
    def stage(x, w, g, b, m, v):
        xc = add_coords_nhwc(x)
        y = jax.lax.conv_general_dilated(
            xc, w, (1, 1), ((1, 1), (1, 1)),
            dimension_numbers=("NHWC", "HWIO", "NHWC"))
        y = (y - m) / jnp.sqrt(v + BN_EPS) * g + b
        return jnp.maximum(y, 0.0)
    x = jnp.transpose(x_nchw, (0, 2, 3, 1)).astype(jnp.float32)
    y = stage(x, p["w1"], p["g1"], p["b1"], p["m1"], p["v1"])
    y = stage(y, p["w2"], p["g2"], p["b2"], p["m2"], p["v2"])
    return jnp.transpose(y, (0, 3, 1, 2))


if __name__ == "__main__":
    key = jax.random.PRNGKey(0)
    kx, kp = jax.random.split(key)

    in_ch, out_ch = 4, 8
    # W*out_ch == 128 lanes; Bt=8 -> M=128 rows per step, grid=(2,) 'parallel'.
    B, H, W = 16, 16, 16
    x = jax.random.normal(kx, (B, in_ch, H, W), jnp.float32)
    params = init_params(kp, in_ch, out_ch)

    out = jax.block_until_ready(double_conv_forward(x, params))
    assert out.shape == (B, out_ch, H, W), out.shape

    # Check vs. a pure-JAX f32 reference of the identical BN-folded math.
    # Tolerances re-baselined for bf16 MXU operands (per the perf review).
    w1f, t1, w2f, t2 = _fold_bn(params)
    ref_f = jax.block_until_ready(_ref_double_conv_folded(x, w1f, t1, w2f, t2))
    err_f = float(jnp.max(jnp.abs(out - ref_f)))
    assert err_f < 6e-2, f"folded-reference max abs error {err_f}"

    # Looser sanity check vs. the literal conv -> BN(eval) -> ReLU reference.
    ref = jax.block_until_ready(_ref_double_conv(x, params))
    err = float(jnp.max(jnp.abs(out - ref)))
    assert err < 8e-2, f"unfolded-reference max abs error {err}"

    print("KERNEL_OK")
</pallas_src>

<mosaic_0001>
module attributes {stable_mosaic.version = 11 : i64} {
  func.func @_double_coordconv_kernel(%arg0: i32, %arg1: memref<128x64xf32, #tpu.memory_space<vmem>>, %arg2: memref<192x128xbf16, #tpu.memory_space<vmem>>, %arg3: memref<128x128xf32, #tpu.memory_space<vmem>>, %arg4: memref<384x128xbf16, #tpu.memory_space<vmem>>, %arg5: memref<128x128xf32, #tpu.memory_space<vmem>>, %arg6: memref<128x128xf32, #tpu.memory_space<vmem>>, %arg7: memref<130x64xf32, #tpu.memory_space<vmem>>, %arg8: memref<128x192xbf16, #tpu.memory_space<vmem>>, %arg9: memref<130x128xf32, #tpu.memory_space<vmem>>, %arg10: memref<128x384xbf16, #tpu.memory_space<vmem>>) attributes {dimension_semantics = [#tpu.dimension_semantics<parallel>], iteration_bounds = array<i64: 2>, scalar_prefetch = 0 : i64, scratch_operands = 4 : i64, tpu.core_type = #tpu.core_type<tc>, window_params = [{transform_indices = @transform_0, window_bounds = array<i64: 128, 64>}, {pipeline_mode = #tpu.pipeline_mode<synchronous>, transform_indices = @transform_1, window_bounds = array<i64: 192, 128>}, {pipeline_mode = #tpu.pipeline_mode<synchronous>, transform_indices = @transform_2, window_bounds = array<i64: 128, 128>}, {pipeline_mode = #tpu.pipeline_mode<synchronous>, transform_indices = @transform_3, window_bounds = array<i64: 384, 128>}, {pipeline_mode = #tpu.pipeline_mode<synchronous>, transform_indices = @transform_4, window_bounds = array<i64: 128, 128>}, {transform_indices = @transform_5, window_bounds = array<i64: 128, 128>}]} {
    %0 = tpu.iota {dimensions = array<i32: 0>} : vector<128x1xi32>
    %c16_i32 = arith.constant 16 : i32
    %c0_i32 = arith.constant 0 : i32
    %1 = arith.cmpi eq, %c16_i32, %c0_i32 : i32
    %c1_i32 = arith.constant 1 : i32
    %2 = arith.select %1, %c1_i32, %c16_i32 : i32
    %3 = vector.broadcast %2 : i32 to vector<128x1xi32>
    %4 = arith.remsi %0, %3 : vector<128x1xi32>
    %c0_i32_0 = arith.constant 0 : i32
    %5 = vector.broadcast %c0_i32_0 : i32 to vector<128x1xi32>
    %6 = arith.cmpi ne, %4, %5 : vector<128x1xi32>
    %c0_i32_1 = arith.constant 0 : i32
    %7 = vector.broadcast %c0_i32_1 : i32 to vector<128x1xi32>
    %8 = arith.cmpi slt, %4, %7 : vector<128x1xi32>
    %c0_i32_2 = arith.constant 0 : i32
    %9 = arith.cmpi slt, %2, %c0_i32_2 : i32
    %10 = vector.broadcast %9 : i1 to vector<128x1xi1>
    %11 = vector.broadcast %10 : vector<128x1xi1> to vector<128x1xi1>
    %12 = arith.xori %8, %11 : vector<128x1xi1>
    %13 = arith.andi %12, %6 : vector<128x1xi1>
    %14 = vector.broadcast %2 : i32 to vector<128x1xi32>
    %15 = arith.addi %4, %14 : vector<128x1xi32>
    %16 = arith.select %13, %15, %4 : vector<128x1xi1>, vector<128x1xi32>
    %c0_i32_3 = arith.constant 0 : i32
    %17 = vector.broadcast %c0_i32_3 : i32 to vector<128x1xi32>
    %18 = arith.cmpi sgt, %16, %17 : vector<128x1xi32>
    %c15_i32 = arith.constant 15 : i32
    %19 = vector.broadcast %c15_i32 : i32 to vector<128x1xi32>
    %20 = arith.cmpi slt, %16, %19 : vector<128x1xi32>
    %cst = arith.constant 0.000000e+00 : f32
    %21 = vector.broadcast %cst : f32 to vector<1x64xf32>
    %cst_4 = arith.constant 0.000000e+00 : f32
    %22 = vector.broadcast %cst_4 : f32 to vector<1x128xf32>
    %c0 = arith.constant 0 : index
    %c0_5 = arith.constant 0 : index
    %23 = vector.load %arg1[%c0, %c0_5] : memref<128x64xf32, #tpu.memory_space<vmem>>, vector<128x64xf32>
    %c0_6 = arith.constant 0 : index
    %c0_7 = arith.constant 0 : index
    %24 = vector.load %arg7[%c0_6, %c0_7] : memref<130x64xf32, #tpu.memory_space<vmem>>, vector<1x64xf32>
    tpu.vector_store %arg7[%c0_6, %c0_7], %21 {strides = array<i32>} : memref<130x64xf32, #tpu.memory_space<vmem>>, vector<1x64xf32>,
    %c129 = arith.constant 129 : index
    %c0_8 = arith.constant 0 : index
    %25 = vector.load %arg7[%c129, %c0_8] : memref<130x64xf32, #tpu.memory_space<vmem>>, vector<1x64xf32>
    tpu.vector_store %arg7[%c129, %c0_8], %21 {strides = array<i32>} : memref<130x64xf32, #tpu.memory_space<vmem>>, vector<1x64xf32>,
    %c1 = arith.constant 1 : index
    %c0_9 = arith.constant 0 : index
    %26 = vector.load %arg7[%c1, %c0_9] : memref<130x64xf32, #tpu.memory_space<vmem>>, vector<128x64xf32>
    tpu.vector_store %arg7[%c1, %c0_9], %23 {strides = array<i32>} : memref<130x64xf32, #tpu.memory_space<vmem>>, vector<128x64xf32>,
    %c0_10 = arith.constant 0 : index
    %c0_11 = arith.constant 0 : index
    %27 = vector.load %arg7[%c0_10, %c0_11] : memref<130x64xf32, #tpu.memory_space<vmem>>, vector<128x64xf32>
    %cst_12 = arith.constant 0.000000e+00 : f32
    %28 = vector.shape_cast %18 : vector<128x1xi1> to vector<128x1xi1>
    %29 = vector.broadcast %28 : vector<128x1xi1> to vector<128x64xi1>
    %30 = vector.broadcast %cst_12 : f32 to vector<128x64xf32>
    %31 = arith.select %29, %27, %30 : vector<128x64xi1>, vector<128x64xf32>
    %32 = arith.truncf %31 : vector<128x64xf32> to vector<128x64xbf16>
    %c0_13 = arith.constant 0 : index
    %c0_14 = arith.constant 0 : index
    %33 = vector.load %arg8[%c0_13, %c0_14] : memref<128x192xbf16, #tpu.memory_space<vmem>>, vector<128x64xbf16>
    tpu.vector_store %arg8[%c0_13, %c0_14], %32 {strides = array<i32>} : memref<128x192xbf16, #tpu.memory_space<vmem>>, vector<128x64xbf16>,
    %34 = arith.truncf %23 : vector<128x64xf32> to vector<128x64xbf16>
    %c0_15 = arith.constant 0 : index
    %c64 = arith.constant 64 : index
    %35 = vector.load %arg8[%c0_15, %c64] : memref<128x192xbf16, #tpu.memory_space<vmem>>, vector<128x64xbf16>
    tpu.vector_store %arg8[%c0_15, %c64], %34 {strides = array<i32>} : memref<128x192xbf16, #tpu.memory_space<vmem>>, vector<128x64xbf16>,
    %c2 = arith.constant 2 : index
    %c0_16 = arith.constant 0 : index
    %36 = vector.load %arg7[%c2, %c0_16] : memref<130x64xf32, #tpu.memory_space<vmem>>, vector<128x64xf32>
    %cst_17 = arith.constant 0.000000e+00 : f32
    %37 = vector.shape_cast %20 : vector<128x1xi1> to vector<128x1xi1>
    %38 = vector.broadcast %37 : vector<128x1xi1> to vector<128x64xi1>
    %39 = vector.broadcast %cst_17 : f32 to vector<128x64xf32>
    %40 = arith.select %38, %36, %39 : vector<128x64xi1>, vector<128x64xf32>
    %41 = arith.truncf %40 : vector<128x64xf32> to vector<128x64xbf16>
    %c0_18 = arith.constant 0 : index
    %c128 = arith.constant 128 : index
    %42 = vector.load %arg8[%c0_18, %c128] : memref<128x192xbf16, #tpu.memory_space<vmem>>, vector<128x64xbf16>
    tpu.vector_store %arg8[%c0_18, %c128], %41 {strides = array<i32>} : memref<128x192xbf16, #tpu.memory_space<vmem>>, vector<128x64xbf16>,
    %c0_19 = arith.constant 0 : index
    %c0_20 = arith.constant 0 : index
    %43 = vector.load %arg3[%c0_19, %c0_20] : memref<128x128xf32, #tpu.memory_space<vmem>>, vector<128x128xf32>
    %c0_21 = arith.constant 0 : index
    %c0_22 = arith.constant 0 : index
    %44 = vector.load %arg8[%c0_21, %c0_22] : memref<128x192xbf16, #tpu.memory_space<vmem>>, vector<128x192xbf16>
    %c0_23 = arith.constant 0 : index
    %c0_24 = arith.constant 0 : index
    %45 = vector.load %arg2[%c0_23, %c0_24] : memref<192x128xbf16, #tpu.memory_space<vmem>>, vector<192x128xbf16>
    %cst_25 = arith.constant dense<0.000000e+00> : vector<128x128xf32>
    %46 = tpu.matmul %44, %45, %cst_25 {dimension_numbers = #tpu.dot_dimension_numbers<[1], [0], [0], [1], [0, 0, 1, 1], [], []>} : vector<128x192xbf16>, vector<192x128xbf16>, vector<128x128xf32> -> vector<128x128xf32>
    %47 = arith.addf %43, %46 : vector<128x128xf32>
    %cst_26 = arith.constant 0.000000e+00 : f32
    %48 = vector.broadcast %cst_26 : f32 to vector<128x128xf32>
    %49 = arith.maximumf %47, %48 : vector<128x128xf32>
    %c0_27 = arith.constant 0 : index
    %c0_28 = arith.constant 0 : index
    %50 = vector.load %arg9[%c0_27, %c0_28] : memref<130x128xf32, #tpu.memory_space<vmem>>, vector<1x128xf32>
    tpu.vector_store %arg9[%c0_27, %c0_28], %22 {strides = array<i32>} : memref<130x128xf32, #tpu.memory_space<vmem>>, vector<1x128xf32>,
    %c129_29 = arith.constant 129 : index
    %c0_30 = arith.constant 0 : index
    %51 = vector.load %arg9[%c129_29, %c0_30] : memref<130x128xf32, #tpu.memory_space<vmem>>, vector<1x128xf32>
    tpu.vector_store %arg9[%c129_29, %c0_30], %22 {strides = array<i32>} : memref<130x128xf32, #tpu.memory_space<vmem>>, vector<1x128xf32>,
    %c1_31 = arith.constant 1 : index
    %c0_32 = arith.constant 0 : index
    %52 = vector.load %arg9[%c1_31, %c0_32] : memref<130x128xf32, #tpu.memory_space<vmem>>, vector<128x128xf32>
    tpu.vector_store %arg9[%c1_31, %c0_32], %49 {strides = array<i32>} : memref<130x128xf32, #tpu.memory_space<vmem>>, vector<128x128xf32>,
    %c0_33 = arith.constant 0 : index
    %c0_34 = arith.constant 0 : index
    %53 = vector.load %arg9[%c0_33, %c0_34] : memref<130x128xf32, #tpu.memory_space<vmem>>, vector<128x128xf32>
    %cst_35 = arith.constant 0.000000e+00 : f32
    %54 = vector.shape_cast %18 : vector<128x1xi1> to vector<128x1xi1>
    %55 = vector.broadcast %54 : vector<128x1xi1> to vector<128x128xi1>
    %56 = vector.broadcast %cst_35 : f32 to vector<128x128xf32>
    %57 = arith.select %55, %53, %56 : vector<128x128xi1>, vector<128x128xf32>
    %58 = arith.truncf %57 : vector<128x128xf32> to vector<128x128xbf16>
    %c0_36 = arith.constant 0 : index
    %c0_37 = arith.constant 0 : index
    %59 = vector.load %arg10[%c0_36, %c0_37] : memref<128x384xbf16, #tpu.memory_space<vmem>>, vector<128x128xbf16>
    tpu.vector_store %arg10[%c0_36, %c0_37], %58 {strides = array<i32>} : memref<128x384xbf16, #tpu.memory_space<vmem>>, vector<128x128xbf16>,
    %60 = arith.truncf %49 : vector<128x128xf32> to vector<128x128xbf16>
    %c0_38 = arith.constant 0 : index
    %c128_39 = arith.constant 128 : index
    %61 = vector.load %arg10[%c0_38, %c128_39] : memref<128x384xbf16, #tpu.memory_space<vmem>>, vector<128x128xbf16>
    tpu.vector_store %arg10[%c0_38, %c128_39], %60 {strides = array<i32>} : memref<128x384xbf16, #tpu.memory_space<vmem>>, vector<128x128xbf16>,
    %c2_40 = arith.constant 2 : index
    %c0_41 = arith.constant 0 : index
    %62 = vector.load %arg9[%c2_40, %c0_41] : memref<130x128xf32, #tpu.memory_space<vmem>>, vector<128x128xf32>
    %cst_42 = arith.constant 0.000000e+00 : f32
    %63 = vector.shape_cast %20 : vector<128x1xi1> to vector<128x1xi1>
    %64 = vector.broadcast %63 : vector<128x1xi1> to vector<128x128xi1>
    %65 = vector.broadcast %cst_42 : f32 to vector<128x128xf32>
    %66 = arith.select %64, %62, %65 : vector<128x128xi1>, vector<128x128xf32>
    %67 = arith.truncf %66 : vector<128x128xf32> to vector<128x128xbf16>
    %c0_43 = arith.constant 0 : index
    %c256 = arith.constant 256 : index
    %68 = vector.load %arg10[%c0_43, %c256] : memref<128x384xbf16, #tpu.memory_space<vmem>>, vector<128x128xbf16>
    tpu.vector_store %arg10[%c0_43, %c256], %67 {strides = array<i32>} : memref<128x384xbf16, #tpu.memory_space<vmem>>, vector<128x128xbf16>,
    %c0_44 = arith.constant 0 : index
    %c0_45 = arith.constant 0 : index
    %69 = vector.load %arg5[%c0_44, %c0_45] : memref<128x128xf32, #tpu.memory_space<vmem>>, vector<128x128xf32>
    %c0_46 = arith.constant 0 : index
    %c0_47 = arith.constant 0 : index
    %70 = vector.load %arg10[%c0_46, %c0_47] : memref<128x384xbf16, #tpu.memory_space<vmem>>, vector<128x384xbf16>
    %c0_48 = arith.constant 0 : index
    %c0_49 = arith.constant 0 : index
    %71 = vector.load %arg4[%c0_48, %c0_49] : memref<384x128xbf16, #tpu.memory_space<vmem>>, vector<384x128xbf16>
    %cst_50 = arith.constant dense<0.000000e+00> : vector<128x128xf32>
    %72 = tpu.matmul %70, %71, %cst_50 {dimension_numbers = #tpu.dot_dimension_numbers<[1], [0], [0], [1], [0, 0, 1, 1], [], []>} : vector<128x384xbf16>, vector<384x128xbf16>, vector<128x128xf32> -> vector<128x128xf32>
    %73 = arith.addf %69, %72 : vector<128x128xf32>
    %cst_51 = arith.constant 0.000000e+00 : f32
    %74 = vector.broadcast %cst_51 : f32 to vector<128x128xf32>
    %75 = arith.maximumf %73, %74 : vector<128x128xf32>
    %c0_52 = arith.constant 0 : index
    %c0_53 = arith.constant 0 : index
    %76 = vector.load %arg6[%c0_52, %c0_53] : memref<128x128xf32, #tpu.memory_space<vmem>>, vector<128x128xf32>
    tpu.vector_store %arg6[%c0_52, %c0_53], %75 {strides = array<i32>} : memref<128x128xf32, #tpu.memory_space<vmem>>, vector<128x128xf32>,
    return
  }
  func.func @transform_0(%arg0: i32) -> (i32, i32) {
    %c0_i32 = arith.constant 0 : i32
    %c0_i32_0 = arith.constant 0 : i32
    return %arg0, %c0_i32 : i32, i32
  }
  func.func @transform_1(%arg0: i32) -> (i32, i32) {
    %c0_i32 = arith.constant 0 : i32
    %c0_i32_0 = arith.constant 0 : i32
    %c0_i32_1 = arith.constant 0 : i32
    return %c0_i32, %c0_i32_0 : i32, i32
  }
  func.func @transform_2(%arg0: i32) -> (i32, i32) {
    %c0_i32 = arith.constant 0 : i32
    %c0_i32_0 = arith.constant 0 : i32
    %c0_i32_1 = arith.constant 0 : i32
    return %c0_i32, %c0_i32_0 : i32, i32
  }
  func.func @transform_3(%arg0: i32) -> (i32, i32) {
    %c0_i32 = arith.constant 0 : i32
    %c0_i32_0 = arith.constant 0 : i32
    %c0_i32_1 = arith.constant 0 : i32
    return %c0_i32, %c0_i32_0 : i32, i32
  }
  func.func @transform_4(%arg0: i32) -> (i32, i32) {
    %c0_i32 = arith.constant 0 : i32
    %c0_i32_0 = arith.constant 0 : i32
    %c0_i32_1 = arith.constant 0 : i32
    return %c0_i32, %c0_i32_0 : i32, i32
  }
  func.func @transform_5(%arg0: i32) -> (i32, i32) {
    %c0_i32 = arith.constant 0 : i32
    %c0_i32_0 = arith.constant 0 : i32
    return %arg0, %c0_i32 : i32, i32
  }
}

</mosaic_0001>

<llo_original>
// kernel: double_conv_forward.1
$region0: #{double_conv_forward.1}
  #allocation0 [shape = 'u32[]', space=smem, size = 0x4, offset = 0x4, fixed_abs, tag = 'smem constant byte address 0x4 - core index']
  #allocation1 [shape = 'u32[144,128]{1,0:T(1,128)}', space=vmem, size = 0x12000, scoped, tag = 'internal scratch']
  #allocation2 [shape = 'f32[130,64]{1,0:T(8,128)}', space=vmem, size = 0x11000, scoped, tag = 'scratch operand']
  #allocation3 [shape = 'bf16[128,192]{1,0:T(16,128)(2,1)}', space=vmem, size = 0x10000, scoped, tag = 'scratch operand']
  #allocation4 [shape = 'f32[130,128]{1,0:T(8,128)}', space=vmem, size = 0x11000, scoped, tag = 'scratch operand']
  #allocation5 [shape = 'bf16[128,384]{1,0:T(16,128)(2,1)}', space=vmem, size = 0x18000, scoped, tag = 'scratch operand']
  %s0 = inlined_call_operand.vmem [shape: f32[256,64], index: 0, kind: input, shape index: {}]
  %s1 = inlined_call_operand.vmem [shape: bf16[192,128], index: 1, kind: input, shape index: {}]
  %s2 = inlined_call_operand.vmem [shape: f32[128,128], index: 2, kind: input, shape index: {}]
  %s3 = inlined_call_operand.vmem [shape: bf16[384,128], index: 3, kind: input, shape index: {}]
  %s4 = inlined_call_operand.vmem [shape: f32[128,128], index: 4, kind: input, shape index: {}]
  %s5 = inlined_call_operand.vmem [shape: f32[256,128], index: 5, kind: output, shape index: {}]
  %s6 = sld [smem:[#allocation0]]
  $region53: #{double_conv_forward.1} parent=0
    _
  %s8 = ssub.s32 1, %s6
  %s9 = scalar_select 0, %s8, %s6
  loop: start=0, step=1, limit=4
  $region2: #{double_conv_forward.1} parent=0 // loop_pre_header
    _
  $region3: #{double_conv_forward.1} parent=0 // loop_header
    %s11 = sphi 0, %s15
    %p12 = scmp.ge.s32.totalorder %s11, 4
    %s21 = sphi 0, %s23
    %s24 = sphi 0, %s21
    %s25 = sphi 0, %s24
    %s41 = sphi 0, %s25
    %s45 = sphi 0, %s45
    %s47 = sphi 0, %s45
    %s48 = sphi 0, %s47
    %s62 = sphi 0, %s48
    %s66 = sphi 0, %s66
    %s68 = sphi 0, %s66
    %s69 = sphi 0, %s68
    %s83 = sphi 0, %s69
    %s87 = sphi 0, %s87
    %s89 = sphi 0, %s87
    %s90 = sphi 0, %s89
    %s104 = sphi 0, %s90
    %s108 = sphi 0, %s108
    %s110 = sphi 0, %s108
    %s111 = sphi 0, %s110
    %s125 = sphi 0, %s111
    %s131 = sphi 0, %s133
    %s134 = sphi 0, %s131
    %s135 = sphi 0, %s134
    %s151 = sphi 0, %s135
  $region4: #{double_conv_forward.1} parent=0 // loop_header_branch
    %14 = sbr.rel (%p12) target = $region8
  $region5: #{double_conv_forward.1} parent=0 // loop_body
    %s16 = ssub.s32 %s11, 1
    %s17 = ssub.s32 %s11, 2
    %s18 = sadd.s32 %s11, 1
    %s19 = ssub.s32 %s11, %s18
    %p20 = scmp.eq.s32.totalorder %s19, 0
    %s22 = sadd.s32 %s21, 1
    %s23 = scalar_select %p20, %s21, %s22
    %p26 = pneg %p20
    %p27 = scmp.eq.s32.totalorder %s11, 1
    %p28 = por %p26, %p27
    %p29 = scmp.ne.s32.totalorder %s21, %s24
    %p30 = scmp.eq.s32.totalorder %s11, 0
    %p31 = por %p29, %p30
    %p32 = scmp.ne.s32.totalorder %s21, %s24
    %p33 = scmp.eq.s32.totalorder %s16, 1
    %p34 = por %p32, %p33
    %p35 = scmp.ne.s32.totalorder %s24, %s25
    %p36 = scmp.eq.s32.totalorder %s16, 0
    %p37 = por %p35, %p36
    %p38 = scmp.ne.s32.totalorder %s24, %s25
    %p39 = scmp.eq.s32.totalorder %s17, 1
    %p40 = por %p38, %p39
    %p42 = scmp.ne.s32.totalorder %s25, %s41
    %p43 = scmp.eq.s32.totalorder %s17, 0
    %p44 = por %p42, %p43
    %s46 = sadd.s32 %s45, 1
    %p49 = scmp.eq.s32.totalorder %s11, 1
    %p50 = scmp.ne.s32.totalorder %s45, %s47
    %p51 = scmp.eq.s32.totalorder %s11, 0
    %p52 = por %p50, %p51
    %p53 = scmp.ne.s32.totalorder %s45, %s47
    %p54 = scmp.eq.s32.totalorder %s16, 1
    %p55 = por %p53, %p54
    %p56 = scmp.ne.s32.totalorder %s47, %s48
    %p57 = scmp.eq.s32.totalorder %s16, 0
    %p58 = por %p56, %p57
    %p59 = scmp.ne.s32.totalorder %s47, %s48
    %p60 = scmp.eq.s32.totalorder %s17, 1
    %p61 = por %p59, %p60
    %p63 = scmp.ne.s32.totalorder %s48, %s62
    %p64 = scmp.eq.s32.totalorder %s17, 0
    %p65 = por %p63, %p64
    %s67 = sadd.s32 %s66, 1
    %p70 = scmp.eq.s32.totalorder %s11, 1
    %p71 = scmp.ne.s32.totalorder %s66, %s68
    %p72 = scmp.eq.s32.totalorder %s11, 0
    %p73 = por %p71, %p72
    %p74 = scmp.ne.s32.totalorder %s66, %s68
    %p75 = scmp.eq.s32.totalorder %s16, 1
    %p76 = por %p74, %p75
    %p77 = scmp.ne.s32.totalorder %s68, %s69
    %p78 = scmp.eq.s32.totalorder %s16, 0
    %p79 = por %p77, %p78
    %p80 = scmp.ne.s32.totalorder %s68, %s69
    %p81 = scmp.eq.s32.totalorder %s17, 1
    %p82 = por %p80, %p81
    %p84 = scmp.ne.s32.totalorder %s69, %s83
    %p85 = scmp.eq.s32.totalorder %s17, 0
    %p86 = por %p84, %p85
    %s88 = sadd.s32 %s87, 1
    %p91 = scmp.eq.s32.totalorder %s11, 1
    %p92 = scmp.ne.s32.totalorder %s87, %s89
    %p93 = scmp.eq.s32.totalorder %s11, 0
    %p94 = por %p92, %p93
    %p95 = scmp.ne.s32.totalorder %s87, %s89
    %p96 = scmp.eq.s32.totalorder %s16, 1
    %p97 = por %p95, %p96
    %p98 = scmp.ne.s32.totalorder %s89, %s90
    %p99 = scmp.eq.s32.totalorder %s16, 0
    %p100 = por %p98, %p99
    %p101 = scmp.ne.s32.totalorder %s89, %s90
    %p102 = scmp.eq.s32.totalorder %s17, 1
    %p103 = por %p101, %p102
    %p105 = scmp.ne.s32.totalorder %s90, %s104
    %p106 = scmp.eq.s32.totalorder %s17, 0
    %p107 = por %p105, %p106
    %s109 = sadd.s32 %s108, 1
    %p112 = scmp.eq.s32.totalorder %s11, 1
    %p113 = scmp.ne.s32.totalorder %s108, %s110
    %p114 = scmp.eq.s32.totalorder %s11, 0
    %p115 = por %p113, %p114
    %p116 = scmp.ne.s32.totalorder %s108, %s110
    %p117 = scmp.eq.s32.totalorder %s16, 1
    %p118 = por %p116, %p117
    %p119 = scmp.ne.s32.totalorder %s110, %s111
    %p120 = scmp.eq.s32.totalorder %s16, 0
    %p121 = por %p119, %p120
    %p122 = scmp.ne.s32.totalorder %s110, %s111
    %p123 = scmp.eq.s32.totalorder %s17, 1
    %p124 = por %p122, %p123
    %p126 = scmp.ne.s32.totalorder %s111, %s125
    %p127 = scmp.eq.s32.totalorder %s17, 0
    %p128 = por %p126, %p127
    %s129 = ssub.s32 %s11, %s18
    %p130 = scmp.eq.s32.totalorder %s129, 0
    %s132 = sadd.s32 %s131, 1
    %s133 = scalar_select %p130, %s131, %s132
    %p136 = pneg %p130
    %p137 = scmp.eq.s32.totalorder %s11, 1
    %p138 = por %p136, %p137
    %p139 = scmp.ne.s32.totalorder %s131, %s134
    %p140 = scmp.eq.s32.totalorder %s11, 0
    %p141 = por %p139, %p140
    %p142 = scmp.ne.s32.totalorder %s131, %s134
    %p143 = scmp.eq.s32.totalorder %s16, 1
    %p144 = por %p142, %p143
    %p145 = scmp.ne.s32.totalorder %s134, %s135
    %p146 = scmp.eq.s32.totalorder %s16, 0
    %p147 = por %p145, %p146
    %p148 = scmp.ne.s32.totalorder %s134, %s135
    %p149 = scmp.eq.s32.totalorder %s17, 1
    %p150 = por %p148, %p149
    %p152 = scmp.ne.s32.totalorder %s135, %s151
    %p153 = scmp.eq.s32.totalorder %s17, 0
    %p154 = por %p152, %p153
    %p155 = scmp.le.s32.totalorder 1, %s11
    %p156 = scmp.lt.s32.totalorder %s11, 3
    %p157 = pnand %p155, %p156
    %p158 = pneg %p157
    // Predicated region
    $region9: #{double_conv_forward.1} parent=5 // pred_check
      _
    $region10: #{double_conv_forward.1} parent=5 // pred_check_branch
      %160 = sbr.rel (%p157) target = $region12
    $region11: #{double_conv_forward.1} parent=5 // pred_region
      %s161 = ssub.s32 %s11, 1
      // Predicated region
      $region13: #{double_conv_forward.1} parent=11 // pred_check
        %p162 = pneg %p58
      $region14: #{double_conv_forward.1} parent=11 // pred_check_branch
        %164 = sbr.rel (%p162) target = $region16
      $region15: #{double_conv_forward.1} parent=11 // pred_region
        _
      $region16: #{double_conv_forward.1} parent=11 // pred_fallthru
        _
      // Predicated region
      $region17: #{double_conv_forward.1} parent=11 // pred_check
        %p165 = pneg %p79
      $region18: #{double_conv_forward.1} parent=11 // pred_check_branch
        %167 = sbr.rel (%p165) target = $region20
      $region19: #{double_conv_forward.1} parent=11 // pred_region
        _
      $region20: #{double_conv_forward.1} parent=11 // pred_fallthru
        _
      // Predicated region
      $region21: #{double_conv_forward.1} parent=11 // pred_check
        %p168 = pneg %p100
      $region22: #{double_conv_forward.1} parent=11 // pred_check_branch
        %170 = sbr.rel (%p168) target = $region24
      $region23: #{double_conv_forward.1} parent=11 // pred_region
        _
      $region24: #{double_conv_forward.1} parent=11 // pred_fallthru
        _
      // Predicated region
      $region25: #{double_conv_forward.1} parent=11 // pred_check
        %p171 = pneg %p121
      $region26: #{double_conv_forward.1} parent=11 // pred_check_branch
        %173 = sbr.rel (%p171) target = $region28
      $region27: #{double_conv_forward.1} parent=11 // pred_region
        _
      $region28: #{double_conv_forward.1} parent=11 // pred_fallthru
        _
    $region12: #{double_conv_forward.1} parent=5 // pred_fallthru
      _
    %p174 = scmp.lt.s32.totalorder %s11, 2
    // Predicated region
    $region29: #{double_conv_forward.1} parent=5 // pred_check
      %p175 = pneg %p174
    $region30: #{double_conv_forward.1} parent=5 // pred_check_branch
      %177 = sbr.rel (%p175) target = $region32
    $region31: #{double_conv_forward.1} parent=5 // pred_region
      // Predicated region
      $region33: #{double_conv_forward.1} parent=31 // pred_check
        %p178 = pneg %p31
      $region34: #{double_conv_forward.1} parent=31 // pred_check_branch
        %180 = sbr.rel (%p178) target = $region36
      $region35: #{double_conv_forward.1} parent=31 // pred_region
        %s181 = smul.u32 16, %s11
        %p182 = scmp.lt.s32.totalorder %s181, 31
        %s183 = scalar_select %p182, %s181, 31
        %s184 = smul.addr %s183, 8
        %s185 = scalar_lea.vmem %s0, %s184
        %s186 = smul.u32 16, %s11
      $region36: #{double_conv_forward.1} parent=31 // pred_fallthru
        _
    $region32: #{double_conv_forward.1} parent=5 // pred_fallthru
      _
    %p187 = scmp.le.s32.totalorder 1, %s11
    %p188 = scmp.lt.s32.totalorder %s11, 3
    %p189 = pnand %p187, %p188
    %p190 = pneg %p189
    // Predicated region
    $region37: #{double_conv_forward.1} parent=5 // pred_check
      _
    $region38: #{double_conv_forward.1} parent=5 // pred_check_branch
      %192 = sbr.rel (%p189) target = $region40
    $region39: #{double_conv_forward.1} parent=5 // pred_region
      %s193 = ssub.s32 %s11, 1
      %s194 = smul.u32 16, %s16
      %p195 = scmp.lt.s32.totalorder %s194, 31
      %s196 = scalar_select %p195, %s194, 31
      %s197 = smul.addr %s196, 8
      %s198 = scalar_lea.vmem %s0, %s197
      %p199 = pneg %p37
      %p200 = pneg %p34
      %p201 = pneg %p58
      %p202 = pneg %p55
      %p203 = pneg %p79
      %p204 = pneg %p76
      %p205 = pneg %p100
      %p206 = pneg %p97
      %p207 = pneg %p121
      %p208 = pneg %p118
      %p209 = pneg %p147
      %p210 = pneg %p144
      %s211 = smul.u32 16, %s16
      %p212 = scmp.lt.s32.totalorder %s211, 31
      %s213 = scalar_select %p212, %s211, 31
      %s214 = smul.addr %s213, 8
      %s215 = scalar_lea.vmem %s5, %s214
      %s216 = smul.u32 16, %s16
      %p217 = scmp.lt.s32.totalorder %s216, 31
      %s218 = scalar_select %p217, %s216, 31
      %s219 = smul.addr %s218, 8
      %s220 = scalar_lea.vmem %s0, %s219
      %s221 = smul.u32 16, %s16
      %s222 = smul.u32 16, %s16
      %p223 = scmp.lt.s32.totalorder %s222, 31
      %s224 = scalar_select %p223, %s222, 31
      %s225 = smul.addr %s224, 8
      %s226 = scalar_lea.vmem %s5, %s225
      %s227 = smul.u32 16, %s16
      %v229 = vlaneseq
      %v230 = vshrl.u32 %v229, 7
      %v231 = vadd.s32 %v230, 8
      %v232 = vadd.s32 %v230, 16
      %v233 = vadd.s32 %v230, 24
      %v234 = vadd.s32 %v230, 32
      %v235 = vadd.s32 %v230, 40
      %v236 = vadd.s32 %v230, 48
      %v237 = vadd.s32 %v230, 56
      %v238 = vadd.s32 %v230, 64
      %v239 = vadd.s32 %v230, 72
      %v240 = vadd.s32 %v230, 80
      %v241 = vadd.s32 %v230, 88
      %v242 = vadd.s32 %v230, 96
      %v243 = vadd.s32 %v230, 104
      %v244 = vadd.s32 %v230, 112
      %v245 = vadd.s32 %v230, 120
      %vm246 = vcmp.lt.s32.totalorder %v230, 0
      %v247 = vsub.s32 0, %v230
      %v248 = vsel %vm246, %v247, %v230
      %v249 = vshrl.u32 %v248, 4
      %v250 = vand.u32 %v248, 15
      %v251 = vsub.s32 0, %v250
      %v252 = vsel %vm246, %v251, %v250
      %vm253 = vcmp.lt.s32.totalorder %v231, 0
      %v254 = vsub.s32 0, %v231
      %v255 = vsel %vm253, %v254, %v231
      %v256 = vshrl.u32 %v255, 4
      %v257 = vand.u32 %v255, 15
      %v258 = vsub.s32 0, %v257
      %v259 = vsel %vm253, %v258, %v257
      %vm260 = vcmp.lt.s32.totalorder %v232, 0
      %v261 = vsub.s32 0, %v232
      %v262 = vsel %vm260, %v261, %v232
      %v263 = vshrl.u32 %v262, 4
      %v264 = vand.u32 %v262, 15
      %v265 = vsub.s32 0, %v264
      %v266 = vsel %vm260, %v265, %v264
      %vm267 = vcmp.lt.s32.totalorder %v233, 0
      %v268 = vsub.s32 0, %v233
      %v269 = vsel %vm267, %v268, %v233
      %v270 = vshrl.u32 %v269, 4
      %v271 = vand.u32 %v269, 15
      %v272 = vsub.s32 0, %v271
      %v273 = vsel %vm267, %v272, %v271
      %vm274 = vcmp.lt.s32.totalorder %v234, 0
      %v275 = vsub.s32 0, %v234
      %v276 = vsel %vm274, %v275, %v234
      %v277 = vshrl.u32 %v276, 4
      %v278 = vand.u32 %v276, 15
      %v279 = vsub.s32 0, %v278
      %v280 = vsel %vm274, %v279, %v278
      %vm281 = vcmp.lt.s32.totalorder %v235, 0
      %v282 = vsub.s32 0, %v235
      %v283 = vsel %vm281, %v282, %v235
      %v284 = vshrl.u32 %v283, 4
      %v285 = vand.u32 %v283, 15
      %v286 = vsub.s32 0, %v285
      %v287 = vsel %vm281, %v286, %v285
      %vm288 = vcmp.lt.s32.totalorder %v236, 0
      %v289 = vsub.s32 0, %v236
      %v290 = vsel %vm288, %v289, %v236
      %v291 = vshrl.u32 %v290, 4
      %v292 = vand.u32 %v290, 15
      %v293 = vsub.s32 0, %v292
      %v294 = vsel %vm288, %v293, %v292
      %vm295 = vcmp.lt.s32.totalorder %v237, 0
      %v296 = vsub.s32 0, %v237
      %v297 = vsel %vm295, %v296, %v237
      %v298 = vshrl.u32 %v297, 4
      %v299 = vand.u32 %v297, 15
      %v300 = vsub.s32 0, %v299
      %v301 = vsel %vm295, %v300, %v299
      %vm302 = vcmp.lt.s32.totalorder %v238, 0
      %v303 = vsub.s32 0, %v238
      %v304 = vsel %vm302, %v303, %v238
      %v305 = vshrl.u32 %v304, 4
      %v306 = vand.u32 %v304, 15
      %v307 = vsub.s32 0, %v306
      %v308 = vsel %vm302, %v307, %v306
      %vm309 = vcmp.lt.s32.totalorder %v239, 0
      %v310 = vsub.s32 0, %v239
      %v311 = vsel %vm309, %v310, %v239
      %v312 = vshrl.u32 %v311, 4
      %v313 = vand.u32 %v311, 15
      %v314 = vsub.s32 0, %v313
      %v315 = vsel %vm309, %v314, %v313
      %vm316 = vcmp.lt.s32.totalorder %v240, 0
      %v317 = vsub.s32 0, %v240
      %v318 = vsel %vm316, %v317, %v240
      %v319 = vshrl.u32 %v318, 4
      %v320 = vand.u32 %v318, 15
      %v321 = vsub.s32 0, %v320
      %v322 = vsel %vm316, %v321, %v320
      %vm323 = vcmp.lt.s32.totalorder %v241, 0
      %v324 = vsub.s32 0, %v241
      %v325 = vsel %vm323, %v324, %v241
      %v326 = vshrl.u32 %v325, 4
      %v327 = vand.u32 %v325, 15
      %v328 = vsub.s32 0, %v327
      %v329 = vsel %vm323, %v328, %v327
      %vm330 = vcmp.lt.s32.totalorder %v242, 0
      %v331 = vsub.s32 0, %v242
      %v332 = vsel %vm330, %v331, %v242
      %v333 = vshrl.u32 %v332, 4
      %v334 = vand.u32 %v332, 15
      %v335 = vsub.s32 0, %v334
      %v336 = vsel %vm330, %v335, %v334
      %vm337 = vcmp.lt.s32.totalorder %v243, 0
      %v338 = vsub.s32 0, %v243
      %v339 = vsel %vm337, %v338, %v243
      %v340 = vshrl.u32 %v339, 4
      %v341 = vand.u32 %v339, 15
      %v342 = vsub.s32 0, %v341
      %v343 = vsel %vm337, %v342, %v341
      %vm344 = vcmp.lt.s32.totalorder %v244, 0
      %v345 = vsub.s32 0, %v244
      %v346 = vsel %vm344, %v345, %v244
      %v347 = vshrl.u32 %v346, 4
      %v348 = vand.u32 %v346, 15
      %v349 = vsub.s32 0, %v348
      %v350 = vsel %vm344, %v349, %v348
      %vm351 = vcmp.lt.s32.totalorder %v245, 0
      %v352 = vsub.s32 0, %v245
      %v353 = vsel %vm351, %v352, %v245
      %v354 = vshrl.u32 %v353, 4
      %v355 = vand.u32 %v353, 15
      %v356 = vsub.s32 0, %v355
      %v357 = vsel %vm351, %v356, %v355
      %vm358 = vcmp.ne.s32.totalorder %v252, 0
      %vm359 = vcmp.ne.s32.totalorder %v259, 0
      %vm360 = vcmp.ne.s32.totalorder %v266, 0
      %vm361 = vcmp.ne.s32.totalorder %v273, 0
      %vm362 = vcmp.ne.s32.totalorder %v280, 0
      %vm363 = vcmp.ne.s32.totalorder %v287, 0
      %vm364 = vcmp.ne.s32.totalorder %v294, 0
      %vm365 = vcmp.ne.s32.totalorder %v301, 0
      %vm366 = vcmp.ne.s32.totalorder %v308, 0
      %vm367 = vcmp.ne.s32.totalorder %v315, 0
      %vm368 = vcmp.ne.s32.totalorder %v322, 0
      %vm369 = vcmp.ne.s32.totalorder %v329, 0
      %vm370 = vcmp.ne.s32.totalorder %v336, 0
      %vm371 = vcmp.ne.s32.totalorder %v343, 0
      %vm372 = vcmp.ne.s32.totalorder %v350, 0
      %vm373 = vcmp.ne.s32.totalorder %v357, 0
      %vm374 = vcmp.lt.s32.totalorder %v252, 0
      %vm375 = vcmp.lt.s32.totalorder %v259, 0
      %vm376 = vcmp.lt.s32.totalorder %v266, 0
      %vm377 = vcmp.lt.s32.totalorder %v273, 0
      %vm378 = vcmp.lt.s32.totalorder %v280, 0
      %vm379 = vcmp.lt.s32.totalorder %v287, 0
      %vm380 = vcmp.lt.s32.totalorder %v294, 0
      %vm381 = vcmp.lt.s32.totalorder %v301, 0
      %vm382 = vcmp.lt.s32.totalorder %v308, 0
      %vm383 = vcmp.lt.s32.totalorder %v315, 0
      %vm384 = vcmp.lt.s32.totalorder %v322, 0
      %vm385 = vcmp.lt.s32.totalorder %v329, 0
      %vm386 = vcmp.lt.s32.totalorder %v336, 0
      %vm387 = vcmp.lt.s32.totalorder %v343, 0
      %vm388 = vcmp.lt.s32.totalorder %v350, 0
      %vm389 = vcmp.lt.s32.totalorder %v357, 0
      %vm390 = vmand %vm374, %vm358
      %vm391 = vmand %vm375, %vm359
      %vm392 = vmand %vm376, %vm360
      %vm393 = vmand %vm377, %vm361
      %vm394 = vmand %vm378, %vm362
      %vm395 = vmand %vm379, %vm363
      %vm396 = vmand %vm380, %vm364
      %vm397 = vmand %vm381, %vm365
      %vm398 = vmand %vm382, %vm366
      %vm399 = vmand %vm383, %vm367
      %vm400 = vmand %vm384, %vm368
      %vm401 = vmand %vm385, %vm369
      %vm402 = vmand %vm386, %vm370
      %vm403 = vmand %vm387, %vm371
      %vm404 = vmand %vm388, %vm372
      %vm405 = vmand %vm389, %vm373
      %v406 = vadd.s32 %v252, 16
      %v407 = vadd.s32 %v259, 16
      %v408 = vadd.s32 %v266, 16
      %v409 = vadd.s32 %v273, 16
      %v410 = vadd.s32 %v280, 16
      %v411 = vadd.s32 %v287, 16
      %v412 = vadd.s32 %v294, 16
      %v413 = vadd.s32 %v301, 16
      %v414 = vadd.s32 %v308, 16
      %v415 = vadd.s32 %v315, 16
      %v416 = vadd.s32 %v322, 16
      %v417 = vadd.s32 %v329, 16
      %v418 = vadd.s32 %v336, 16
      %v419 = vadd.s32 %v343, 16
      %v420 = vadd.s32 %v350, 16
      %v421 = vadd.s32 %v357, 16
      %v422 = vsel %vm390, %v406, %v252
      %v423 = vsel %vm391, %v407, %v259
      %v424 = vsel %vm392, %v408, %v266
      %v425 = vsel %vm393, %v409, %v273
      %v426 = vsel %vm394, %v410, %v280
      %v427 = vsel %vm395, %v411, %v287
      %v428 = vsel %vm396, %v412, %v294
      %v429 = vsel %vm397, %v413, %v301
      %v430 = vsel %vm398, %v414, %v308
      %v431 = vsel %vm399, %v415, %v315
      %v432 = vsel %vm400, %v416, %v322
      %v433 = vsel %vm401, %v417, %v329
      %v434 = vsel %vm402, %v418, %v336
      %v435 = vsel %vm403, %v419, %v343
      %v436 = vsel %vm404, %v420, %v350
      %v437 = vsel %vm405, %v421, %v357
      %vm438 = vcmp.gt.s32.totalorder %v422, 0
      %vm439 = vcmp.gt.s32.totalorder %v423, 0
      %vm440 = vcmp.gt.s32.totalorder %v424, 0
      %vm441 = vcmp.gt.s32.totalorder %v425, 0
      %vm442 = vcmp.gt.s32.totalorder %v426, 0
      %vm443 = vcmp.gt.s32.totalorder %v427, 0
      %vm444 = vcmp.gt.s32.totalorder %v428, 0
      %vm445 = vcmp.gt.s32.totalorder %v429, 0
      %vm446 = vcmp.gt.s32.totalorder %v430, 0
      %vm447 = vcmp.gt.s32.totalorder %v431, 0
      %vm448 = vcmp.gt.s32.totalorder %v432, 0
      %vm449 = vcmp.gt.s32.totalorder %v433, 0
      %vm450 = vcmp.gt.s32.totalorder %v434, 0
      %vm451 = vcmp.gt.s32.totalorder %v435, 0
      %vm452 = vcmp.gt.s32.totalorder %v436, 0
      %vm453 = vcmp.gt.s32.totalorder %v437, 0
      %vm454 = vcmp.lt.s32.totalorder %v422, 15
      %vm455 = vcmp.lt.s32.totalorder %v423, 15
      %vm456 = vcmp.lt.s32.totalorder %v424, 15
      %vm457 = vcmp.lt.s32.totalorder %v425, 15
      %vm458 = vcmp.lt.s32.totalorder %v426, 15
      %vm459 = vcmp.lt.s32.totalorder %v427, 15
      %vm460 = vcmp.lt.s32.totalorder %v428, 15
      %vm461 = vcmp.lt.s32.totalorder %v429, 15
      %vm462 = vcmp.lt.s32.totalorder %v430, 15
      %vm463 = vcmp.lt.s32.totalorder %v431, 15
      %vm464 = vcmp.lt.s32.totalorder %v432, 15
      %vm465 = vcmp.lt.s32.totalorder %v433, 15
      %vm466 = vcmp.lt.s32.totalorder %v434, 15
      %vm467 = vcmp.lt.s32.totalorder %v435, 15
      %vm468 = vcmp.lt.s32.totalorder %v436, 15
      %vm469 = vcmp.lt.s32.totalorder %v437, 15
      %v470 = vld [vmem:[%s220] sm:$0xff]
      %v471 = vld [vmem:[%s220 + $0x8] sm:$0xff]
      %v472 = vld [vmem:[%s220 + $0x10] sm:$0xff]
      %v473 = vld [vmem:[%s220 + $0x18] sm:$0xff]
      %v474 = vld [vmem:[%s220 + $0x20] sm:$0xff]
      %v475 = vld [vmem:[%s220 + $0x28] sm:$0xff]
      %v476 = vld [vmem:[%s220 + $0x30] sm:$0xff]
      %v477 = vld [vmem:[%s220 + $0x38] sm:$0xff]
      %v478 = vld [vmem:[%s220 + $0x40] sm:$0xff]
      %v479 = vld [vmem:[%s220 + $0x48] sm:$0xff]
      %v480 = vld [vmem:[%s220 + $0x50] sm:$0xff]
      %v481 = vld [vmem:[%s220 + $0x58] sm:$0xff]
      %v482 = vld [vmem:[%s220 + $0x60] sm:$0xff]
      %v483 = vld [vmem:[%s220 + $0x68] sm:$0xff]
      %v484 = vld [vmem:[%s220 + $0x70] sm:$0xff]
      %v485 = vld [vmem:[%s220 + $0x78] sm:$0xff]
      %vm486 = vcmask 516096
      %487 = vst.msk [vmem:[#allocation2] sm:$0x1] %vm486, 0.0
      %488 = vst.msk [vmem:[#allocation2 + $0x81] sm:$0x1] %vm486, 0.0
      %vm489 = vcmask 523264
      %490 = vst.msk [vmem:[#allocation2 + $0x1] sm:$0xff] %vm489, %v470
      %491 = vst.msk [vmem:[#allocation2 + $0x9] sm:$0xff] %vm489, %v471
      %492 = vst.msk [vmem:[#allocation2 + $0x11] sm:$0xff] %vm489, %v472
      %493 = vst.msk [vmem:[#allocation2 + $0x19] sm:$0xff] %vm489, %v473
      %494 = vst.msk [vmem:[#allocation2 + $0x21] sm:$0xff] %vm489, %v474
      %495 = vst.msk [vmem:[#allocation2 + $0x29] sm:$0xff] %vm489, %v475
      %496 = vst.msk [vmem:[#allocation2 + $0x31] sm:$0xff] %vm489, %v476
      %497 = vst.msk [vmem:[#allocation2 + $0x39] sm:$0xff] %vm489, %v477
      %498 = vst.msk [vmem:[#allocation2 + $0x41] sm:$0xff] %vm489, %v478
      %499 = vst.msk [vmem:[#allocation2 + $0x49] sm:$0xff] %vm489, %v479
      %500 = vst.msk [vmem:[#allocation2 + $0x51] sm:$0xff] %vm489, %v480
      %501 = vst.msk [vmem:[#allocation2 + $0x59] sm:$0xff] %vm489, %v481
      %502 = vst.msk [vmem:[#allocation2 + $0x61] sm:$0xff] %vm489, %v482
      %503 = vst.msk [vmem:[#allocation2 + $0x69] sm:$0xff] %vm489, %v483
      %504 = vst.msk [vmem:[#allocation2 + $0x71] sm:$0xff] %vm489, %v484
      %505 = vst.msk [vmem:[#allocation2 + $0x79] sm:$0xff] %vm489, %v485
      %v506 = vld [vmem:[#allocation2] sm:$0xff]
      %v507 = vld [vmem:[#allocation2 + $0x8] sm:$0xff]
      %v508 = vld [vmem:[#allocation2 + $0x10] sm:$0xff]
      %v509 = vld [vmem:[#allocation2 + $0x18] sm:$0xff]
      %v510 = vld [vmem:[#allocation2 + $0x20] sm:$0xff]
      %v511 = vld [vmem:[#allocation2 + $0x28] sm:$0xff]
      %v512 = vld [vmem:[#allocation2 + $0x30] sm:$0xff]
      %v513 = vld [vmem:[#allocation2 + $0x38] sm:$0xff]
      %v514 = vld [vmem:[#allocation2 + $0x40] sm:$0xff]
      %v515 = vld [vmem:[#allocation2 + $0x48] sm:$0xff]
      %v516 = vld [vmem:[#allocation2 + $0x50] sm:$0xff]
      %v517 = vld [vmem:[#allocation2 + $0x58] sm:$0xff]
      %v518 = vld [vmem:[#allocation2 + $0x60] sm:$0xff]
      %v519 = vld [vmem:[#allocation2 + $0x68] sm:$0xff]
      %v520 = vld [vmem:[#allocation2 + $0x70] sm:$0xff]
      %v521 = vld [vmem:[#allocation2 + $0x78] sm:$0xff]
      %v522 = vsel %vm438, 1, 0
      %v523 = vsel %vm439, 1, 0
      %v524 = vsel %vm440, 1, 0
      %v525 = vsel %vm441, 1, 0
      %v526 = vsel %vm442, 1, 0
      %v527 = vsel %vm443, 1, 0
      %v528 = vsel %vm444, 1, 0
      %v529 = vsel %vm445, 1, 0
      %v530 = vsel %vm446, 1, 0
      %v531 = vsel %vm447, 1, 0
      %v532 = vsel %vm448, 1, 0
      %v533 = vsel %vm449, 1, 0
      %v534 = vsel %vm450, 1, 0
      %v535 = vsel %vm451, 1, 0
      %v536 = vsel %vm452, 1, 0
      %v537 = vsel %vm453, 1, 0
      %vm538 = vcmp.eq.s32.totalorder %v522, 1
      %vm539 = vcmp.eq.s32.totalorder %v523, 1
      %vm540 = vcmp.eq.s32.totalorder %v524, 1
      %vm541 = vcmp.eq.s32.totalorder %v525, 1
      %vm542 = vcmp.eq.s32.totalorder %v526, 1
      %vm543 = vcmp.eq.s32.totalorder %v527, 1
      %vm544 = vcmp.eq.s32.totalorder %v528, 1
      %vm545 = vcmp.eq.s32.totalorder %v529, 1
      %vm546 = vcmp.eq.s32.totalorder %v530, 1
      %vm547 = vcmp.eq.s32.totalorder %v531, 1
      %vm548 = vcmp.eq.s32.totalorder %v532, 1
      %vm549 = vcmp.eq.s32.totalorder %v533, 1
      %vm550 = vcmp.eq.s32.totalorder %v534, 1
      %vm551 = vcmp.eq.s32.totalorder %v535, 1
      %vm552 = vcmp.eq.s32.totalorder %v536, 1
      %vm553 = vcmp.eq.s32.totalorder %v537, 1
      %v554 = vsel %vm538, %v506, 0.0
      %v555 = vsel %vm539, %v507, 0.0
      %v556 = vsel %vm540, %v508, 0.0
      %v557 = vsel %vm541, %v509, 0.0
      %v558 = vsel %vm542, %v510, 0.0
      %v559 = vsel %vm543, %v511, 0.0
      %v560 = vsel %vm544, %v512, 0.0
      %v561 = vsel %vm545, %v513, 0.0
      %v562 = vsel %vm546, %v514, 0.0
      %v563 = vsel %vm547, %v515, 0.0
      %v564 = vsel %vm548, %v516, 0.0
      %v565 = vsel %vm549, %v517, 0.0
      %v566 = vsel %vm550, %v518, 0.0
      %v567 = vsel %vm551, %v519, 0.0
      %v568 = vsel %vm552, %v520, 0.0
      %v569 = vsel %vm553, %v521, 0.0
      %v570 = vpack.c.bf16 %v555, %v554
      %v571 = vpack.c.bf16 %v557, %v556
      %v572 = vpack.c.bf16 %v559, %v558
      %v573 = vpack.c.bf16 %v561, %v560
      %v574 = vpack.c.bf16 %v563, %v562
      %v575 = vpack.c.bf16 %v565, %v564
      %v576 = vpack.c.bf16 %v567, %v566
      %v577 = vpack.c.bf16 %v569, %v568
      %578 = vst.msk [vmem:[#allocation3] sm:$0xff] %vm489, %v570
      %579 = vst.msk [vmem:[#allocation3 + $0x10] sm:$0xff] %vm489, %v571
      %580 = vst.msk [vmem:[#allocation3 + $0x20] sm:$0xff] %vm489, %v572
      %581 = vst.msk [vmem:[#allocation3 + $0x30] sm:$0xff] %vm489, %v573
      %582 = vst.msk [vmem:[#allocation3 + $0x40] sm:$0xff] %vm489, %v574
      %583 = vst.msk [vmem:[#allocation3 + $0x50] sm:$0xff] %vm489, %v575
      %584 = vst.msk [vmem:[#allocation3 + $0x60] sm:$0xff] %vm489, %v576
      %585 = vst.msk [vmem:[#allocation3 + $0x70] sm:$0xff] %vm489, %v577
      %v586 = vpack.c.bf16 %v471, %v470
      %v587 = vpack.c.bf16 %v473, %v472
      %v588 = vpack.c.bf16 %v475, %v474
      %v589 = vpack.c.bf16 %v477, %v476
      %v590 = vpack.c.bf16 %v479, %v478
      %v591 = vpack.c.bf16 %v481, %v480
      %v592 = vpack.c.bf16 %v483, %v482
      %v593 = vpack.c.bf16 %v485, %v484
      %602 = vrot.lane.b32.xlu0 %v586, 64
      %v603 = vpop.permute.xlu0 %602
      %604 = vrot.lane.b32.xlu0 %v587, 64
      %v605 = vpop.permute.xlu0 %604
      %606 = vrot.lane.b32.xlu0 %v588, 64
      %v607 = vpop.permute.xlu0 %606
      %608 = vrot.lane.b32.xlu0 %v589, 64
      %v609 = vpop.permute.xlu0 %608
      %610 = vrot.lane.b32.xlu0 %v590, 64
      %v611 = vpop.permute.xlu0 %610
      %612 = vrot.lane.b32.xlu0 %v591, 64
      %v613 = vpop.permute.xlu0 %612
      %614 = vrot.lane.b32.xlu0 %v592, 64
      %v615 = vpop.permute.xlu0 %614
      %616 = vrot.lane.b32.xlu0 %v593, 64
      %v617 = vpop.permute.xlu0 %616
      %vm626 = vcmask 1048064
      %627 = vst.msk [vmem:[#allocation3] sm:$0xff] %vm626, %v603
      %628 = vst.msk [vmem:[#allocation3 + $0x10] sm:$0xff] %vm626, %v605
      %629 = vst.msk [vmem:[#allocation3 + $0x20] sm:$0xff] %vm626, %v607
      %630 = vst.msk [vmem:[#allocation3 + $0x30] sm:$0xff] %vm626, %v609
      %631 = vst.msk [vmem:[#allocation3 + $0x40] sm:$0xff] %vm626, %v611
      %632 = vst.msk [vmem:[#allocation3 + $0x50] sm:$0xff] %vm626, %v613
      %633 = vst.msk [vmem:[#allocation3 + $0x60] sm:$0xff] %vm626, %v615
      %634 = vst.msk [vmem:[#allocation3 + $0x70] sm:$0xff] %vm626, %v617
      %v635 = vld [vmem:[#allocation2 + $0x2] sm:$0xff]
      %v636 = vld [vmem:[#allocation2 + $0xa] sm:$0xff]
      %v637 = vld [vmem:[#allocation2 + $0x12] sm:$0xff]
      %v638 = vld [vmem:[#allocation2 + $0x1a] sm:$0xff]
      %v639 = vld [vmem:[#allocation2 + $0x22] sm:$0xff]
      %v640 = vld [vmem:[#allocation2 + $0x2a] sm:$0xff]
      %v641 = vld [vmem:[#allocation2 + $0x32] sm:$0xff]
      %v642 = vld [vmem:[#allocation2 + $0x3a] sm:$0xff]
      %v643 = vld [vmem:[#allocation2 + $0x42] sm:$0xff]
      %v644 = vld [vmem:[#allocation2 + $0x4a] sm:$0xff]
      %v645 = vld [vmem:[#allocation2 + $0x52] sm:$0xff]
      %v646 = vld [vmem:[#allocation2 + $0x5a] sm:$0xff]
      %v647 = vld [vmem:[#allocation2 + $0x62] sm:$0xff]
      %v648 = vld [vmem:[#allocation2 + $0x6a] sm:$0xff]
      %v649 = vld [vmem:[#allocation2 + $0x72] sm:$0xff]
      %v650 = vld [vmem:[#allocation2 + $0x7a] sm:$0xff]
      %v651 = vsel %vm454, 1, 0
      %v652 = vsel %vm455, 1, 0
      %v653 = vsel %vm456, 1, 0
      %v654 = vsel %vm457, 1, 0
      %v655 = vsel %vm458, 1, 0
      %v656 = vsel %vm459, 1, 0
      %v657 = vsel %vm460, 1, 0
      %v658 = vsel %vm461, 1, 0
      %v659 = vsel %vm462, 1, 0
      %v660 = vsel %vm463, 1, 0
      %v661 = vsel %vm464, 1, 0
      %v662 = vsel %vm465, 1, 0
      %v663 = vsel %vm466, 1, 0
      %v664 = vsel %vm467, 1, 0
      %v665 = vsel %vm468, 1, 0
      %v666 = vsel %vm469, 1, 0
      %vm667 = vcmp.eq.s32.totalorder %v651, 1
      %vm668 = vcmp.eq.s32.totalorder %v652, 1
      %vm669 = vcmp.eq.s32.totalorder %v653, 1
      %vm670 = vcmp.eq.s32.totalorder %v654, 1
      %vm671 = vcmp.eq.s32.totalorder %v655, 1
      %vm672 = vcmp.eq.s32.totalorder %v656, 1
      %vm673 = vcmp.eq.s32.totalorder %v657, 1
      %vm674 = vcmp.eq.s32.totalorder %v658, 1
      %vm675 = vcmp.eq.s32.totalorder %v659, 1
      %vm676 = vcmp.eq.s32.totalorder %v660, 1
      %vm677 = vcmp.eq.s32.totalorder %v661, 1
      %vm678 = vcmp.eq.s32.totalorder %v662, 1
      %vm679 = vcmp.eq.s32.totalorder %v663, 1
      %vm680 = vcmp.eq.s32.totalorder %v664, 1
      %vm681 = vcmp.eq.s32.totalorder %v665, 1
      %vm682 = vcmp.eq.s32.totalorder %v666, 1
      %v683 = vsel %vm667, %v635, 0.0
      %v684 = vsel %vm668, %v636, 0.0
      %v685 = vsel %vm669, %v637, 0.0
      %v686 = vsel %vm670, %v638, 0.0
      %v687 = vsel %vm671, %v639, 0.0
      %v688 = vsel %vm672, %v640, 0.0
      %v689 = vsel %vm673, %v641, 0.0
      %v690 = vsel %vm674, %v642, 0.0
      %v691 = vsel %vm675, %v643, 0.0
      %v692 = vsel %vm676, %v644, 0.0
      %v693 = vsel %vm677, %v645, 0.0
      %v694 = vsel %vm678, %v646, 0.0
      %v695 = vsel %vm679, %v647, 0.0
      %v696 = vsel %vm680, %v648, 0.0
      %v697 = vsel %vm681, %v649, 0.0
      %v698 = vsel %vm682, %v650, 0.0
      %v699 = vpack.c.bf16 %v684, %v683
      %v700 = vpack.c.bf16 %v686, %v685
      %v701 = vpack.c.bf16 %v688, %v687
      %v702 = vpack.c.bf16 %v690, %v689
      %v703 = vpack.c.bf16 %v692, %v691
      %v704 = vpack.c.bf16 %v694, %v693
      %v705 = vpack.c.bf16 %v696, %v695
      %v706 = vpack.c.bf16 %v698, %v697
      %707 = vst.msk [vmem:[#allocation3 + $0x8] sm:$0xff] %vm489, %v699
      %708 = vst.msk [vmem:[#allocation3 + $0x18] sm:$0xff] %vm489, %v700
      %709 = vst.msk [vmem:[#allocation3 + $0x28] sm:$0xff] %vm489, %v701
      %710 = vst.msk [vmem:[#allocation3 + $0x38] sm:$0xff] %vm489, %v702
      %711 = vst.msk [vmem:[#allocation3 + $0x48] sm:$0xff] %vm489, %v703
      %712 = vst.msk [vmem:[#allocation3 + $0x58] sm:$0xff] %vm489, %v704
      %713 = vst.msk [vmem:[#allocation3 + $0x68] sm:$0xff] %vm489, %v705
      %714 = vst.msk [vmem:[#allocation3 + $0x78] sm:$0xff] %vm489, %v706
      %v715 = vld [vmem:[%s2] sm:$0xff]
      %v716 = vld [vmem:[%s2 + $0x8] sm:$0xff]
      %v717 = vld [vmem:[%s2 + $0x10] sm:$0xff]
      %v718 = vld [vmem:[%s2 + $0x18] sm:$0xff]
      %v719 = vld [vmem:[%s2 + $0x20] sm:$0xff]
      %v720 = vld [vmem:[%s2 + $0x28] sm:$0xff]
      %v721 = vld [vmem:[%s2 + $0x30] sm:$0xff]
      %v722 = vld [vmem:[%s2 + $0x38] sm:$0xff]
      %v723 = vld [vmem:[%s2 + $0x40] sm:$0xff]
      %v724 = vld [vmem:[%s2 + $0x48] sm:$0xff]
      %v725 = vld [vmem:[%s2 + $0x50] sm:$0xff]
      %v726 = vld [vmem:[%s2 + $0x58] sm:$0xff]
      %v727 = vld [vmem:[%s2 + $0x60] sm:$0xff]
      %v728 = vld [vmem:[%s2 + $0x68] sm:$0xff]
      %v729 = vld [vmem:[%s2 + $0x70] sm:$0xff]
      %v730 = vld [vmem:[%s2 + $0x78] sm:$0xff]
      %v731 = vld [vmem:[#allocation3] sm:$0xff]
      %v732 = vld [vmem:[#allocation3 + $0x8] sm:$0xff]
      %v733 = vld [vmem:[#allocation3 + $0x10] sm:$0xff]
      %v734 = vld [vmem:[#allocation3 + $0x18] sm:$0xff]
      %v735 = vld [vmem:[#allocation3 + $0x20] sm:$0xff]
      %v736 = vld [vmem:[#allocation3 + $0x28] sm:$0xff]
      %v737 = vld [vmem:[#allocation3 + $0x30] sm:$0xff]
      %v738 = vld [vmem:[#allocation3 + $0x38] sm:$0xff]
      %v739 = vld [vmem:[#allocation3 + $0x40] sm:$0xff]
      %v740 = vld [vmem:[#allocation3 + $0x48] sm:$0xff]
      %v741 = vld [vmem:[#allocation3 + $0x50] sm:$0xff]
      %v742 = vld [vmem:[#allocation3 + $0x58] sm:$0xff]
      %v743 = vld [vmem:[#allocation3 + $0x60] sm:$0xff]
      %v744 = vld [vmem:[#allocation3 + $0x68] sm:$0xff]
      %v745 = vld [vmem:[#allocation3 + $0x70] sm:$0xff]
      %v746 = vld [vmem:[#allocation3 + $0x78] sm:$0xff]
      %v747 = vld [vmem:[%s1] sm:$0xf]
      %v748 = vld [vmem:[%s1 + $0x4] sm:$0xf]
      %v749 = vld [vmem:[%s1 + $0x8] sm:$0xf]
      %v750 = vld [vmem:[%s1 + $0xc] sm:$0xf]
      %v751 = vld [vmem:[%s1 + $0x10] sm:$0xf]
      %v752 = vld [vmem:[%s1 + $0x14] sm:$0xf]
      %v753 = vld [vmem:[%s1 + $0x18] sm:$0xf]
      %v754 = vld [vmem:[%s1 + $0x1c] sm:$0xf]
      %v755 = vld [vmem:[%s1 + $0x20] sm:$0xf]
      %v756 = vld [vmem:[%s1 + $0x24] sm:$0xf]
      %v757 = vld [vmem:[%s1 + $0x28] sm:$0xf]
      %v758 = vld [vmem:[%s1 + $0x2c] sm:$0xf]
      %v759 = vld [vmem:[%s1 + $0x30] sm:$0xf]
      %v760 = vld [vmem:[%s1 + $0x34] sm:$0xf]
      %v761 = vld [vmem:[%s1 + $0x38] sm:$0xf]
      %v762 = vld [vmem:[%s1 + $0x3c] sm:$0xf]
      %v763 = vld [vmem:[%s1 + $0x40] sm:$0xf]
      %v764 = vld [vmem:[%s1 + $0x44] sm:$0xf]
      %v765 = vld [vmem:[%s1 + $0x48] sm:$0xf]
      %v766 = vld [vmem:[%s1 + $0x4c] sm:$0xf]
      %v767 = vld [vmem:[%s1 + $0x50] sm:$0xf]
      %v768 = vld [vmem:[%s1 + $0x54] sm:$0xf]
      %v769 = vld [vmem:[%s1 + $0x58] sm:$0xf]
      %v770 = vld [vmem:[%s1 + $0x5c] sm:$0xf]
      %v795 = vunpack.c.l.b16 %v747
      %v796 = vunpack.c.l.b16 %v748
      %v797 = vunpack.c.l.b16 %v749
      %v798 = vunpack.c.l.b16 %v750
      %v799 = vunpack.c.l.b16 %v751
      %v800 = vunpack.c.l.b16 %v752
      %v801 = vunpack.c.l.b16 %v753
      %v802 = vunpack.c.l.b16 %v754
      %v803 = vunpack.c.l.b16 %v755
      %v804 = vunpack.c.l.b16 %v756
      %v805 = vunpack.c.l.b16 %v757
      %v806 = vunpack.c.l.b16 %v758
      %v807 = vunpack.c.l.b16 %v759
      %v808 = vunpack.c.l.b16 %v760
      %v809 = vunpack.c.l.b16 %v761
      %v810 = vunpack.c.l.b16 %v762
      %v811 = vunpack.c.l.b16 %v763
      %v812 = vunpack.c.l.b16 %v764
      %v813 = vunpack.c.l.b16 %v765
      %v814 = vunpack.c.l.b16 %v766
      %v815 = vunpack.c.l.b16 %v767
      %v816 = vunpack.c.l.b16 %v768
      %v817 = vunpack.c.l.b16 %v769
      %v818 = vunpack.c.l.b16 %v770
      %v819 = vpack.c.b16 %v796, %v795
      %v820 = vpack.c.b16 %v798, %v797
      %v821 = vpack.c.b16 %v800, %v799
      %v822 = vpack.c.b16 %v802, %v801
      %v823 = vpack.c.b16 %v804, %v803
      %v824 = vpack.c.b16 %v806, %v805
      %v825 = vpack.c.b16 %v808, %v807
      %v826 = vpack.c.b16 %v810, %v809
      %v827 = vpack.c.b16 %v812, %v811
      %v828 = vpack.c.b16 %v814, %v813
      %v829 = vpack.c.b16 %v816, %v815
      %v830 = vpack.c.b16 %v818, %v817
      %v844 = vsel %vm489, %v732, 0
      %v847 = vsel %vm489, %v734, 0
      %v850 = vsel %vm489, %v736, 0
      %v853 = vsel %vm489, %v738, 0
      %v856 = vsel %vm489, %v740, 0
      %v859 = vsel %vm489, %v742, 0
      %v862 = vsel %vm489, %v744, 0
      %v865 = vsel %vm489, %v746, 0
      %867 = vmatprep.subr.bf16.mxu0 0
      %868 = vmatpush1.bf16.msra.mxu0 %v819
      %869 = vmatprep.subr.bf16.mxu0 0
      %870 = vmatpush1.bf16.msra.mxu0 %v820
      %871 = vmatprep.subr.bf16.mxu0 0
      %872 = vmatpush1.bf16.msra.mxu0 %v821
      %873 = vmatprep.subr.bf16.mxu0 0
      %874 = vmatpush1.bf16.msra.mxu0 %v822
      %875 = vmatprep.subr.bf16.mxu0 0
      %876 = vmatpush1.bf16.msra.mxu0 %v823
      %877 = vmatprep.subr.bf16.mxu0 0
      %878 = vmatpush1.bf16.msra.mxu0 %v824
      %879 = vmatprep.subr.bf16.mxu0 0
      %880 = vmatpush1.bf16.msra.mxu0 %v825
      %881 = vmatprep.subr.bf16.mxu0 0
      %882 = vmatpush1.bf16.msra.mxu0 %v826
      %883 = vmatprep.subr.bf16.mxu0 0
      %884 = vmatpush1.bf16.msra.mxu0 %v827
      %885 = vmatprep.subr.bf16.mxu0 0
      %886 = vmatpush1.bf16.msra.mxu0 %v828
      %887 = vmatprep.subr.bf16.mxu0 0
      %888 = vmatpush1.bf16.msra.mxu0 %v829
      %889 = vmatprep.subr.bf16.mxu0 0
      %890 = vmatpush1.bf16.msra.mxu0 %v830
      %891 = vmatprep.subr.bf16.mxu0 0
      %892 = vmatpush1.bf16.msra.mxu0 0
      %893 = vmatprep.subr.bf16.mxu0 0
      %894 = vmatpush1.bf16.msra.mxu0 0
      %895 = vmatprep.subr.bf16.mxu0 0
      %896 = vmatpush1.bf16.msra.mxu0 0
      %897 = vmatprep.subr.bf16.mxu0 0
      %898 = vmatpush1.bf16.msra.mxu0 0
      %899 = vmatprep.mubr.bf16.mxu0 %v844
      %900 = vmatmul.mubr.bf16.gmra.mrb[0].mxu0 %v731
      %v901 = vpop.f32.mrb[0].mxu0
      %v902 = vadd.f32 0.0, %v901
      %v903 = vpop.f32.mrb[0].mxu0
      %v904 = vpop.f32.mrb[0].mxu0
      %v905 = vadd.f32 0.0, %v904
      %v906 = vpop.f32.mrb[0].mxu0
      %907 = vmatprep.mubr.bf16.mxu0 %v847
      %908 = vmatmul.mubr.bf16.gmra.mrb[0].mxu0 %v733
      %v909 = vpop.f32.mrb[0].mxu0
      %v910 = vadd.f32 0.0, %v909
      %v911 = vpop.f32.mrb[0].mxu0
      %v912 = vpop.f32.mrb[0].mxu0
      %v913 = vadd.f32 0.0, %v912
      %v914 = vpop.f32.mrb[0].mxu0
      %915 = vmatprep.mubr.bf16.mxu0 %v850
      %916 = vmatmul.mubr.bf16.gmra.mrb[0].mxu0 %v735
      %v917 = vpop.f32.mrb[0].mxu0
      %v918 = vadd.f32 0.0, %v917
      %v919 = vpop.f32.mrb[0].mxu0
      %v920 = vpop.f32.mrb[0].mxu0
      %v921 = vadd.f32 0.0, %v920
      %v922 = vpop.f32.mrb[0].mxu0
      %923 = vmatprep.mubr.bf16.mxu0 %v853
      %924 = vmatmul.mubr.bf16.gmra.mrb[0].mxu0 %v737
      %v925 = vpop.f32.mrb[0].mxu0
      %v926 = vadd.f32 0.0, %v925
      %v927 = vpop.f32.mrb[0].mxu0
      %v928 = vpop.f32.mrb[0].mxu0
      %v929 = vadd.f32 0.0, %v928
      %v930 = vpop.f32.mrb[0].mxu0
      %931 = vmatprep.mubr.bf16.mxu0 %v856
      %932 = vmatmul.mubr.bf16.gmra.mrb[0].mxu0 %v739
      %v933 = vpop.f32.mrb[0].mxu0
      %v934 = vadd.f32 0.0, %v933
      %v935 = vpop.f32.mrb[0].mxu0
      %v936 = vpop.f32.mrb[0].mxu0
      %v937 = vadd.f32 0.0, %v936
      %v938 = vpop.f32.mrb[0].mxu0
      %939 = vmatprep.mubr.bf16.mxu0 %v859
      %940 = vmatmul.mubr.bf16.gmra.mrb[0].mxu0 %v741
      %v941 = vpop.f32.mrb[0].mxu0
      %v942 = vadd.f32 0.0, %v941
      %v943 = vpop.f32.mrb[0].mxu0
      %v944 = vpop.f32.mrb[0].mxu0
      %v945 = vadd.f32 0.0, %v944
      %v946 = vpop.f32.mrb[0].mxu0
      %947 = vmatprep.mubr.bf16.mxu0 %v862
      %948 = vmatmul.mubr.bf16.gmra.mrb[0].mxu0 %v743
      %v949 = vpop.f32.mrb[0].mxu0
      %v950 = vadd.f32 0.0, %v949
      %v951 = vpop.f32.mrb[0].mxu0
      %v952 = vpop.f32.mrb[0].mxu0
      %v953 = vadd.f32 0.0, %v952
      %v954 = vpop.f32.mrb[0].mxu0
      %955 = vmatprep.mubr.bf16.mxu0 %v865
      %956 = vmatmul.mubr.bf16.gmra.mrb[0].mxu0 %v745
      %v957 = vpop.f32.mrb[0].mxu0
      %v958 = vadd.f32 0.0, %v957
      %v959 = vpop.f32.mrb[0].mxu0
      %v960 = vpop.f32.mrb[0].mxu0
      %v961 = vadd.f32 0.0, %v960
      %v962 = vpop.f32.mrb[0].mxu0
      %963 = vdwg.mxu0
      %v964 = vadd.f32 %v715, %v902
      %v965 = vadd.f32 %v716, %v905
      %v966 = vadd.f32 %v717, %v910
      %v967 = vadd.f32 %v718, %v913
      %v968 = vadd.f32 %v719, %v918
      %v969 = vadd.f32 %v720, %v921
      %v970 = vadd.f32 %v721, %v926
      %v971 = vadd.f32 %v722, %v929
      %v972 = vadd.f32 %v723, %v934
      %v973 = vadd.f32 %v724, %v937
      %v974 = vadd.f32 %v725, %v942
      %v975 = vadd.f32 %v726, %v945
      %v976 = vadd.f32 %v727, %v950
      %v977 = vadd.f32 %v728, %v953
      %v978 = vadd.f32 %v729, %v958
      %v979 = vadd.f32 %v730, %v961
      %v980 = vmax.f32 %v964, 0.0
      %v981 = vmax.f32 %v965, 0.0
      %v982 = vmax.f32 %v966, 0.0
      %v983 = vmax.f32 %v967, 0.0
      %v984 = vmax.f32 %v968, 0.0
      %v985 = vmax.f32 %v969, 0.0
      %v986 = vmax.f32 %v970, 0.0
      %v987 = vmax.f32 %v971, 0.0
      %v988 = vmax.f32 %v972, 0.0
      %v989 = vmax.f32 %v973, 0.0
      %v990 = vmax.f32 %v974, 0.0
      %v991 = vmax.f32 %v975, 0.0
      %v992 = vmax.f32 %v976, 0.0
      %v993 = vmax.f32 %v977, 0.0
      %v994 = vmax.f32 %v978, 0.0
      %v995 = vmax.f32 %v979, 0.0
      %996 = vst [vmem:[#allocation4] sm:$0x1] 0.0
      %997 = vst [vmem:[#allocation4 + $0x81] sm:$0x1] 0.0
      %998 = vst [vmem:[#allocation4 + $0x1] sm:$0xff] %v980
      %999 = vst [vmem:[#allocation4 + $0x9] sm:$0xff] %v981
      %1000 = vst [vmem:[#allocation4 + $0x11] sm:$0xff] %v982
      %1001 = vst [vmem:[#allocation4 + $0x19] sm:$0xff] %v983
      %1002 = vst [vmem:[#allocation4 + $0x21] sm:$0xff] %v984
      %1003 = vst [vmem:[#allocation4 + $0x29] sm:$0xff] %v985
      %1004 = vst [vmem:[#allocation4 + $0x31] sm:$0xff] %v986
      %1005 = vst [vmem:[#allocation4 + $0x39] sm:$0xff] %v987
      %1006 = vst [vmem:[#allocation4 + $0x41] sm:$0xff] %v988
      %1007 = vst [vmem:[#allocation4 + $0x49] sm:$0xff] %v989
      %1008 = vst [vmem:[#allocation4 + $0x51] sm:$0xff] %v990
      %1009 = vst [vmem:[#allocation4 + $0x59] sm:$0xff] %v991
      %1010 = vst [vmem:[#allocation4 + $0x61] sm:$0xff] %v992
      %1011 = vst [vmem:[#allocation4 + $0x69] sm:$0xff] %v993
      %1012 = vst [vmem:[#allocation4 + $0x71] sm:$0xff] %v994
      %1013 = vst [vmem:[#allocation4 + $0x79] sm:$0xff] %v995
      %v1014 = vld [vmem:[#allocation4] sm:$0xff]
      %v1015 = vld [vmem:[#allocation4 + $0x8] sm:$0xff]
      %v1016 = vld [vmem:[#allocation4 + $0x10] sm:$0xff]
      %v1017 = vld [vmem:[#allocation4 + $0x18] sm:$0xff]
      %v1018 = vld [vmem:[#allocation4 + $0x20] sm:$0xff]
      %v1019 = vld [vmem:[#allocation4 + $0x28] sm:$0xff]
      %v1020 = vld [vmem:[#allocation4 + $0x30] sm:$0xff]
      %v1021 = vld [vmem:[#allocation4 + $0x38] sm:$0xff]
      %v1022 = vld [vmem:[#allocation4 + $0x40] sm:$0xff]
      %v1023 = vld [vmem:[#allocation4 + $0x48] sm:$0xff]
      %v1024 = vld [vmem:[#allocation4 + $0x50] sm:$0xff]
      %v1025 = vld [vmem:[#allocation4 + $0x58] sm:$0xff]
      %v1026 = vld [vmem:[#allocation4 + $0x60] sm:$0xff]
      %v1027 = vld [vmem:[#allocation4 + $0x68] sm:$0xff]
      %v1028 = vld [vmem:[#allocation4 + $0x70] sm:$0xff]
      %v1029 = vld [vmem:[#allocation4 + $0x78] sm:$0xff]
      %v1030 = vsel %vm538, %v1014, 0.0
      %v1031 = vsel %vm539, %v1015, 0.0
      %v1032 = vsel %vm540, %v1016, 0.0
      %v1033 = vsel %vm541, %v1017, 0.0
      %v1034 = vsel %vm542, %v1018, 0.0
      %v1035 = vsel %vm543, %v1019, 0.0
      %v1036 = vsel %vm544, %v1020, 0.0
      %v1037 = vsel %vm545, %v1021, 0.0
      %v1038 = vsel %vm546, %v1022, 0.0
      %v1039 = vsel %vm547, %v1023, 0.0
      %v1040 = vsel %vm548, %v1024, 0.0
      %v1041 = vsel %vm549, %v1025, 0.0
      %v1042 = vsel %vm550, %v1026, 0.0
      %v1043 = vsel %vm551, %v1027, 0.0
      %v1044 = vsel %vm552, %v1028, 0.0
      %v1045 = vsel %vm553, %v1029, 0.0
      %v1046 = vpack.c.bf16 %v1031, %v1030
      %v1047 = vpack.c.bf16 %v1033, %v1032
      %v1048 = vpack.c.bf16 %v1035, %v1034
      %v1049 = vpack.c.bf16 %v1037, %v1036
      %v1050 = vpack.c.bf16 %v1039, %v1038
      %v1051 = vpack.c.bf16 %v1041, %v1040
      %v1052 = vpack.c.bf16 %v1043, %v1042
      %v1053 = vpack.c.bf16 %v1045, %v1044
      %1054 = vst [vmem:[#allocation5] sm:$0xff] %v1046
      %1055 = vst [vmem:[#allocation5 + $0x18] sm:$0xff] %v1047
      %1056 = vst [vmem:[#allocation5 + $0x30] sm:$0xff] %v1048
      %1057 = vst [vmem:[#allocation5 + $0x48] sm:$0xff] %v1049
      %1058 = vst [vmem:[#allocation5 + $0x60] sm:$0xff] %v1050
      %1059 = vst [vmem:[#allocation5 + $0x78] sm:$0xff] %v1051
      %1060 = vst [vmem:[#allocation5 + $0x90] sm:$0xff] %v1052
      %1061 = vst [vmem:[#allocation5 + $0xa8] sm:$0xff] %v1053
      %v1062 = vpack.c.bf16 %v981, %v980
      %v1063 = vpack.c.bf16 %v983, %v982
      %v1064 = vpack.c.bf16 %v985, %v984
      %v1065 = vpack.c.bf16 %v987, %v986
      %v1066 = vpack.c.bf16 %v989, %v988
      %v1067 = vpack.c.bf16 %v991, %v990
      %v1068 = vpack.c.bf16 %v993, %v992
      %v1069 = vpack.c.bf16 %v995, %v994
      %1070 = vst [vmem:[#allocation5 + $0x8] sm:$0xff] %v1062
      %1071 = vst [vmem:[#allocation5 + $0x20] sm:$0xff] %v1063
      %1072 = vst [vmem:[#allocation5 + $0x38] sm:$0xff] %v1064
      %1073 = vst [vmem:[#allocation5 + $0x50] sm:$0xff] %v1065
      %1074 = vst [vmem:[#allocation5 + $0x68] sm:$0xff] %v1066
      %1075 = vst [vmem:[#allocation5 + $0x80] sm:$0xff] %v1067
      %1076 = vst [vmem:[#allocation5 + $0x98] sm:$0xff] %v1068
      %1077 = vst [vmem:[#allocation5 + $0xb0] sm:$0xff] %v1069
      %v1078 = vld [vmem:[#allocation4 + $0x2] sm:$0xff]
      %v1079 = vld [vmem:[#allocation4 + $0xa] sm:$0xff]
      %v1080 = vld [vmem:[#allocation4 + $0x12] sm:$0xff]
      %v1081 = vld [vmem:[#allocation4 + $0x1a] sm:$0xff]
      %v1082 = vld [vmem:[#allocation4 + $0x22] sm:$0xff]
      %v1083 = vld [vmem:[#allocation4 + $0x2a] sm:$0xff]
      %v1084 = vld [vmem:[#allocation4 + $0x32] sm:$0xff]
      %v1085 = vld [vmem:[#allocation4 + $0x3a] sm:$0xff]
      %v1086 = vld [vmem:[#allocation4 + $0x42] sm:$0xff]
      %v1087 = vld [vmem:[#allocation4 + $0x4a] sm:$0xff]
      %v1088 = vld [vmem:[#allocation4 + $0x52] sm:$0xff]
      %v1089 = vld [vmem:[#allocation4 + $0x5a] sm:$0xff]
      %v1090 = vld [vmem:[#allocation4 + $0x62] sm:$0xff]
      %v1091 = vld [vmem:[#allocation4 + $0x6a] sm:$0xff]
      %v1092 = vld [vmem:[#allocation4 + $0x72] sm:$0xff]
      %v1093 = vld [vmem:[#allocation4 + $0x7a] sm:$0xff]
      %v1094 = vsel %vm667, %v1078, 0.0
      %v1095 = vsel %vm668, %v1079, 0.0
      %v1096 = vsel %vm669, %v1080, 0.0
      %v1097 = vsel %vm670, %v1081, 0.0
      %v1098 = vsel %vm671, %v1082, 0.0
      %v1099 = vsel %vm672, %v1083, 0.0
      %v1100 = vsel %vm673, %v1084, 0.0
      %v1101 = vsel %vm674, %v1085, 0.0
      %v1102 = vsel %vm675, %v1086, 0.0
      %v1103 = vsel %vm676, %v1087, 0.0
      %v1104 = vsel %vm677, %v1088, 0.0
      %v1105 = vsel %vm678, %v1089, 0.0
      %v1106 = vsel %vm679, %v1090, 0.0
      %v1107 = vsel %vm680, %v1091, 0.0
      %v1108 = vsel %vm681, %v1092, 0.0
      %v1109 = vsel %vm682, %v1093, 0.0
      %v1110 = vpack.c.bf16 %v1095, %v1094
      %v1111 = vpack.c.bf16 %v1097, %v1096
      %v1112 = vpack.c.bf16 %v1099, %v1098
      %v1113 = vpack.c.bf16 %v1101, %v1100
      %v1114 = vpack.c.bf16 %v1103, %v1102
      %v1115 = vpack.c.bf16 %v1105, %v1104
      %v1116 = vpack.c.bf16 %v1107, %v1106
      %v1117 = vpack.c.bf16 %v1109, %v1108
      %1118 = vst [vmem:[#allocation5 + $0x10] sm:$0xff] %v1110
      %1119 = vst [vmem:[#allocation5 + $0x28] sm:$0xff] %v1111
      %1120 = vst [vmem:[#allocation5 + $0x40] sm:$0xff] %v1112
      %1121 = vst [vmem:[#allocation5 + $0x58] sm:$0xff] %v1113
      %1122 = vst [vmem:[#allocation5 + $0x70] sm:$0xff] %v1114
      %1123 = vst [vmem:[#allocation5 + $0x88] sm:$0xff] %v1115
      %1124 = vst [vmem:[#allocation5 + $0xa0] sm:$0xff] %v1116
      %1125 = vst [vmem:[#allocation5 + $0xb8] sm:$0xff] %v1117
      %v1126 = vld [vmem:[%s4] sm:$0xff]
      %v1127 = vld [vmem:[%s4 + $0x8] sm:$0xff]
      %v1128 = vld [vmem:[%s4 + $0x10] sm:$0xff]
      %v1129 = vld [vmem:[%s4 + $0x18] sm:$0xff]
      %v1130 = vld [vmem:[%s4 + $0x20] sm:$0xff]
      %v1131 = vld [vmem:[%s4 + $0x28] sm:$0xff]
      %v1132 = vld [vmem:[%s4 + $0x30] sm:$0xff]
      %v1133 = vld [vmem:[%s4 + $0x38] sm:$0xff]
      %v1134 = vld [vmem:[%s4 + $0x40] sm:$0xff]
      %v1135 = vld [vmem:[%s4 + $0x48] sm:$0xff]
      %v1136 = vld [vmem:[%s4 + $0x50] sm:$0xff]
      %v1137 = vld [vmem:[%s4 + $0x58] sm:$0xff]
      %v1138 = vld [vmem:[%s4 + $0x60] sm:$0xff]
      %v1139 = vld [vmem:[%s4 + $0x68] sm:$0xff]
      %v1140 = vld [vmem:[%s4 + $0x70] sm:$0xff]
      %v1141 = vld [vmem:[%s4 + $0x78] sm:$0xff]
      %v1142 = vld [vmem:[#allocation5] sm:$0xff]
      %v1143 = vld [vmem:[#allocation5 + $0x8] sm:$0xff]
      %v1144 = vld [vmem:[#allocation5 + $0x10] sm:$0xff]
      %v1145 = vld [vmem:[#allocation5 + $0x18] sm:$0xff]
      %v1146 = vld [vmem:[#allocation5 + $0x20] sm:$0xff]
      %v1147 = vld [vmem:[#allocation5 + $0x28] sm:$0xff]
      %v1148 = vld [vmem:[#allocation5 + $0x30] sm:$0xff]
      %v1149 = vld [vmem:[#allocation5 + $0x38] sm:$0xff]
      %v1150 = vld [vmem:[#allocation5 + $0x40] sm:$0xff]
      %v1151 = vld [vmem:[#allocation5 + $0x48] sm:$0xff]
      %v1152 = vld [vmem:[#allocation5 + $0x50] sm:$0xff]
      %v1153 = vld [vmem:[#allocation5 + $0x58] sm:$0xff]
      %v1154 = vld [vmem:[#allocation5 + $0x60] sm:$0xff]
      %v1155 = vld [vmem:[#allocation5 + $0x68] sm:$0xff]
      %v1156 = vld [vmem:[#allocation5 + $0x70] sm:$0xff]
      %v1157 = vld [vmem:[#allocation5 + $0x78] sm:$0xff]
      %v1158 = vld [vmem:[#allocation5 + $0x80] sm:$0xff]
      %v1159 = vld [vmem:[#allocation5 + $0x88] sm:$0xff]
      %v1160 = vld [vmem:[#allocation5 + $0x90] sm:$0xff]
      %v1161 = vld [vmem:[#allocation5 + $0x98] sm:$0xff]
      %v1162 = vld [vmem:[#allocation5 + $0xa0] sm:$0xff]
      %v1163 = vld [vmem:[#allocation5 + $0xa8] sm:$0xff]
      %v1164 = vld [vmem:[#allocation5 + $0xb0] sm:$0xff]
      %v1165 = vld [vmem:[#allocation5 + $0xb8] sm:$0xff]
      %v1166 = vld [vmem:[%s3] sm:$0xf]
      %v1167 = vld [vmem:[%s3 + $0x4] sm:$0xf]
      %v1168 = vld [vmem:[%s3 + $0x8] sm:$0xf]
      %v1169 = vld [vmem:[%s3 + $0xc] sm:$0xf]
      %v1170 = vld [vmem:[%s3 + $0x10] sm:$0xf]
      %v1171 = vld [vmem:[%s3 + $0x14] sm:$0xf]
      %v1172 = vld [vmem:[%s3 + $0x18] sm:$0xf]
      %v1173 = vld [vmem:[%s3 + $0x1c] sm:$0xf]
      %v1174 = vld [vmem:[%s3 + $0x20] sm:$0xf]
      %v1175 = vld [vmem:[%s3 + $0x24] sm:$0xf]
      %v1176 = vld [vmem:[%s3 + $0x28] sm:$0xf]
      %v1177 = vld [vmem:[%s3 + $0x2c] sm:$0xf]
      %v1178 = vld [vmem:[%s3 + $0x30] sm:$0xf]
      %v1179 = vld [vmem:[%s3 + $0x34] sm:$0xf]
      %v1180 = vld [vmem:[%s3 + $0x38] sm:$0xf]
      %v1181 = vld [vmem:[%s3 + $0x3c] sm:$0xf]
      %v1182 = vld [vmem:[%s3 + $0x40] sm:$0xf]
      %v1183 = vld [vmem:[%s3 + $0x44] sm:$0xf]
      %v1184 = vld [vmem:[%s3 + $0x48] sm:$0xf]
      %v1185 = vld [vmem:[%s3 + $0x4c] sm:$0xf]
      %v1186 = vld [vmem:[%s3 + $0x50] sm:$0xf]
      %v1187 = vld [vmem:[%s3 + $0x54] sm:$0xf]
      %v1188 = vld [vmem:[%s3 + $0x58] sm:$0xf]
      %v1189 = vld [vmem:[%s3 + $0x5c] sm:$0xf]
      %v1190 = vld [vmem:[%s3 + $0x60] sm:$0xf]
      %v1191 = vld [vmem:[%s3 + $0x64] sm:$0xf]
      %v1192 = vld [vmem:[%s3 + $0x68] sm:$0xf]
      %v1193 = vld [vmem:[%s3 + $0x6c] sm:$0xf]
      %v1194 = vld [vmem:[%s3 + $0x70] sm:$0xf]
      %v1195 = vld [vmem:[%s3 + $0x74] sm:$0xf]
      %v1196 = vld [vmem:[%s3 + $0x78] sm:$0xf]
      %v1197 = vld [vmem:[%s3 + $0x7c] sm:$0xf]
      %v1198 = vld [vmem:[%s3 + $0x80] sm:$0xf]
      %v1199 = vld [vmem:[%s3 + $0x84] sm:$0xf]
      %v1200 = vld [vmem:[%s3 + $0x88] sm:$0xf]
      %v1201 = vld [vmem:[%s3 + $0x8c] sm:$0xf]
      %v1202 = vld [vmem:[%s3 + $0x90] sm:$0xf]
      %v1203 = vld [vmem:[%s3 + $0x94] sm:$0xf]
      %v1204 = vld [vmem:[%s3 + $0x98] sm:$0xf]
      %v1205 = vld [vmem:[%s3 + $0x9c] sm:$0xf]
      %v1206 = vld [vmem:[%s3 + $0xa0] sm:$0xf]
      %v1207 = vld [vmem:[%s3 + $0xa4] sm:$0xf]
      %v1208 = vld [vmem:[%s3 + $0xa8] sm:$0xf]
      %v1209 = vld [vmem:[%s3 + $0xac] sm:$0xf]
      %v1210 = vld [vmem:[%s3 + $0xb0] sm:$0xf]
      %v1211 = vld [vmem:[%s3 + $0xb4] sm:$0xf]
      %v1212 = vld [vmem:[%s3 + $0xb8] sm:$0xf]
      %v1213 = vld [vmem:[%s3 + $0xbc] sm:$0xf]
      %v1262 = vunpack.c.l.b16 %v1166
      %v1263 = vunpack.c.l.b16 %v1167
      %v1264 = vunpack.c.l.b16 %v1168
      %v1265 = vunpack.c.l.b16 %v1169
      %v1266 = vunpack.c.l.b16 %v1170
      %v1267 = vunpack.c.l.b16 %v1171
      %v1268 = vunpack.c.l.b16 %v1172
      %v1269 = vunpack.c.l.b16 %v1173
      %v1270 = vunpack.c.l.b16 %v1174
      %v1271 = vunpack.c.l.b16 %v1175
      %v1272 = vunpack.c.l.b16 %v1176
      %v1273 = vunpack.c.l.b16 %v1177
      %v1274 = vunpack.c.l.b16 %v1178
      %v1275 = vunpack.c.l.b16 %v1179
      %v1276 = vunpack.c.l.b16 %v1180
      %v1277 = vunpack.c.l.b16 %v1181
      %v1278 = vunpack.c.l.b16 %v1182
      %v1279 = vunpack.c.l.b16 %v1183
      %v1280 = vunpack.c.l.b16 %v1184
      %v1281 = vunpack.c.l.b16 %v1185
      %v1282 = vunpack.c.l.b16 %v1186
      %v1283 = vunpack.c.l.b16 %v1187
      %v1284 = vunpack.c.l.b16 %v1188
      %v1285 = vunpack.c.l.b16 %v1189
      %v1286 = vunpack.c.l.b16 %v1190
      %v1287 = vunpack.c.l.b16 %v1191
      %v1288 = vunpack.c.l.b16 %v1192
      %v1289 = vunpack.c.l.b16 %v1193
      %v1290 = vunpack.c.l.b16 %v1194
      %v1291 = vunpack.c.l.b16 %v1195
      %v1292 = vunpack.c.l.b16 %v1196
      %v1293 = vunpack.c.l.b16 %v1197
      %v1294 = vunpack.c.l.b16 %v1198
      %v1295 = vunpack.c.l.b16 %v1199
      %v1296 = vunpack.c.l.b16 %v1200
      %v1297 = vunpack.c.l.b16 %v1201
      %v1298 = vunpack.c.l.b16 %v1202
      %v1299 = vunpack.c.l.b16 %v1203
      %v1300 = vunpack.c.l.b16 %v1204
      %v1301 = vunpack.c.l.b16 %v1205
      %v1302 = vunpack.c.l.b16 %v1206
      %v1303 = vunpack.c.l.b16 %v1207
      %v1304 = vunpack.c.l.b16 %v1208
      %v1305 = vunpack.c.l.b16 %v1209
      %v1306 = vunpack.c.l.b16 %v1210
      %v1307 = vunpack.c.l.b16 %v1211
      %v1308 = vunpack.c.l.b16 %v1212
      %v1309 = vunpack.c.l.b16 %v1213
      %v1310 = vpack.c.b16 %v1263, %v1262
      %v1311 = vpack.c.b16 %v1265, %v1264
      %v1312 = vpack.c.b16 %v1267, %v1266
      %v1313 = vpack.c.b16 %v1269, %v1268
      %v1314 = vpack.c.b16 %v1271, %v1270
      %v1315 = vpack.c.b16 %v1273, %v1272
      %v1316 = vpack.c.b16 %v1275, %v1274
      %v1317 = vpack.c.b16 %v1277, %v1276
      %v1318 = vpack.c.b16 %v1279, %v1278
      %v1319 = vpack.c.b16 %v1281, %v1280
      %v1320 = vpack.c.b16 %v1283, %v1282
      %v1321 = vpack.c.b16 %v1285, %v1284
      %v1322 = vpack.c.b16 %v1287, %v1286
      %v1323 = vpack.c.b16 %v1289, %v1288
      %v1324 = vpack.c.b16 %v1291, %v1290
      %v1325 = vpack.c.b16 %v1293, %v1292
      %v1326 = vpack.c.b16 %v1295, %v1294
      %v1327 = vpack.c.b16 %v1297, %v1296
      %v1328 = vpack.c.b16 %v1299, %v1298
      %v1329 = vpack.c.b16 %v1301, %v1300
      %v1330 = vpack.c.b16 %v1303, %v1302
      %v1331 = vpack.c.b16 %v1305, %v1304
      %v1332 = vpack.c.b16 %v1307, %v1306
      %v1333 = vpack.c.b16 %v1309, %v1308
      %1358 = vmatprep.subr.bf16.mxu0 0
      %1359 = vmatpush1.bf16.msra.mxu0 %v1310
      %1360 = vmatprep.subr.bf16.mxu0 0
      %1361 = vmatpush1.bf16.msra.mxu0 %v1311
      %1362 = vmatprep.subr.bf16.mxu0 0
      %1363 = vmatpush1.bf16.msra.mxu0 %v1312
      %1364 = vmatprep.subr.bf16.mxu0 0
      %1365 = vmatpush1.bf16.msra.mxu0 %v1313
      %1366 = vmatprep.subr.bf16.mxu0 0
      %1367 = vmatpush1.bf16.msra.mxu0 %v1314
      %1368 = vmatprep.subr.bf16.mxu0 0
      %1369 = vmatpush1.bf16.msra.mxu0 %v1315
      %1370 = vmatprep.subr.bf16.mxu0 0
      %1371 = vmatpush1.bf16.msra.mxu0 %v1316
      %1372 = vmatprep.subr.bf16.mxu0 0
      %1373 = vmatpush1.bf16.msra.mxu0 %v1317
      %1374 = vmatprep.subr.bf16.mxu0 0
      %1375 = vmatpush1.bf16.msra.mxu0 %v1318
      %1376 = vmatprep.subr.bf16.mxu0 0
      %1377 = vmatpush1.bf16.msra.mxu0 %v1319
      %1378 = vmatprep.subr.bf16.mxu0 0
      %1379 = vmatpush1.bf16.msra.mxu0 %v1320
      %1380 = vmatprep.subr.bf16.mxu0 0
      %1381 = vmatpush1.bf16.msra.mxu0 %v1321
      %1382 = vmatprep.subr.bf16.mxu0 0
      %1383 = vmatpush1.bf16.msra.mxu0 %v1322
      %1384 = vmatprep.subr.bf16.mxu0 0
      %1385 = vmatpush1.bf16.msra.mxu0 %v1323
      %1386 = vmatprep.subr.bf16.mxu0 0
      %1387 = vmatpush1.bf16.msra.mxu0 %v1324
      %1388 = vmatprep.subr.bf16.mxu0 0
      %1389 = vmatpush1.bf16.msra.mxu0 %v1325
      %1390 = vmatprep.mubr.bf16.mxu0 %v1143
      %1391 = vmatmul.mubr.bf16.gmra.mrb[0].mxu0 %v1142
      %v1392 = vpop.f32.mrb[0].mxu0
      %v1393 = vadd.f32 0.0, %v1392
      %v1394 = vpop.f32.mrb[0].mxu0
      %v1395 = vpop.f32.mrb[0].mxu0
      %v1396 = vadd.f32 0.0, %v1395
      %v1397 = vpop.f32.mrb[0].mxu0
      %1398 = vmatprep.mubr.bf16.mxu0 %v1146
      %1399 = vmatmul.mubr.bf16.gmra.mrb[0].mxu0 %v1145
      %v1400 = vpop.f32.mrb[0].mxu0
      %v1401 = vadd.f32 0.0, %v1400
      %v1402 = vpop.f32.mrb[0].mxu0
      %v1403 = vpop.f32.mrb[0].mxu0
      %v1404 = vadd.f32 0.0, %v1403
      %v1405 = vpop.f32.mrb[0].mxu0
      %1406 = vmatprep.mubr.bf16.mxu0 %v1149
      %1407 = vmatmul.mubr.bf16.gmra.mrb[0].mxu0 %v1148
      %v1408 = vpop.f32.mrb[0].mxu0
      %v1409 = vadd.f32 0.0, %v1408
      %v1410 = vpop.f32.mrb[0].mxu0
      %v1411 = vpop.f32.mrb[0].mxu0
      %v1412 = vadd.f32 0.0, %v1411
      %v1413 = vpop.f32.mrb[0].mxu0
      %1414 = vmatprep.mubr.bf16.mxu0 %v1152
      %1415 = vmatmul.mubr.bf16.gmra.mrb[0].mxu0 %v1151
      %v1416 = vpop.f32.mrb[0].mxu0
      %v1417 = vadd.f32 0.0, %v1416
      %v1418 = vpop.f32.mrb[0].mxu0
      %v1419 = vpop.f32.mrb[0].mxu0
      %v1420 = vadd.f32 0.0, %v1419
      %v1421 = vpop.f32.mrb[0].mxu0
      %1422 = vmatprep.mubr.bf16.mxu0 %v1155
      %1423 = vmatmul.mubr.bf16.gmra.mrb[0].mxu0 %v1154
      %v1424 = vpop.f32.mrb[0].mxu0
      %v1425 = vadd.f32 0.0, %v1424
      %v1426 = vpop.f32.mrb[0].mxu0
      %v1427 = vpop.f32.mrb[0].mxu0
      %v1428 = vadd.f32 0.0, %v1427
      %v1429 = vpop.f32.mrb[0].mxu0
      %1430 = vmatprep.mubr.bf16.mxu0 %v1158
      %1431 = vmatmul.mubr.bf16.gmra.mrb[0].mxu0 %v1157
      %v1432 = vpop.f32.mrb[0].mxu0
      %v1433 = vadd.f32 0.0, %v1432
      %v1434 = vpop.f32.mrb[0].mxu0
      %v1435 = vpop.f32.mrb[0].mxu0
      %v1436 = vadd.f32 0.0, %v1435
      %v1437 = vpop.f32.mrb[0].mxu0
      %1438 = vmatprep.mubr.bf16.mxu0 %v1161
      %1439 = vmatmul.mubr.bf16.gmra.mrb[0].mxu0 %v1160
      %v1440 = vpop.f32.mrb[0].mxu0
      %v1441 = vadd.f32 0.0, %v1440
      %v1442 = vpop.f32.mrb[0].mxu0
      %v1443 = vpop.f32.mrb[0].mxu0
      %v1444 = vadd.f32 0.0, %v1443
      %v1445 = vpop.f32.mrb[0].mxu0
      %1446 = vmatprep.mubr.bf16.mxu0 %v1164
      %1447 = vmatmul.mubr.bf16.gmra.mrb[0].mxu0 %v1163
      %v1448 = vpop.f32.mrb[0].mxu0
      %v1449 = vadd.f32 0.0, %v1448
      %v1450 = vpop.f32.mrb[0].mxu0
      %v1451 = vpop.f32.mrb[0].mxu0
      %v1452 = vadd.f32 0.0, %v1451
      %v1453 = vpop.f32.mrb[0].mxu0
      %1454 = vdwg.mxu0
      %1455 = vmatprep.subr.bf16.mxu0 0
      %1456 = vmatpush1.bf16.msra.mxu0 %v1326
      %1457 = vmatprep.subr.bf16.mxu0 0
      %1458 = vmatpush1.bf16.msra.mxu0 %v1327
      %1459 = vmatprep.subr.bf16.mxu0 0
      %1460 = vmatpush1.bf16.msra.mxu0 %v1328
      %1461 = vmatprep.subr.bf16.mxu0 0
      %1462 = vmatpush1.bf16.msra.mxu0 %v1329
      %1463 = vmatprep.subr.bf16.mxu0 0
      %1464 = vmatpush1.bf16.msra.mxu0 %v1330
      %1465 = vmatprep.subr.bf16.mxu0 0
      %1466 = vmatpush1.bf16.msra.mxu0 %v1331
      %1467 = vmatprep.subr.bf16.mxu0 0
      %1468 = vmatpush1.bf16.msra.mxu0 %v1332
      %1469 = vmatprep.subr.bf16.mxu0 0
      %1470 = vmatpush1.bf16.msra.mxu0 %v1333
      %1471 = vmatprep.subr.bf16.mxu0 0
      %1472 = vmatpush1.bf16.msra.mxu0 0
      %1473 = vmatprep.subr.bf16.mxu0 0
      %1474 = vmatpush1.bf16.msra.mxu0 0
      %1475 = vmatprep.subr.bf16.mxu0 0
      %1476 = vmatpush1.bf16.msra.mxu0 0
      %1477 = vmatprep.subr.bf16.mxu0 0
      %1478 = vmatpush1.bf16.msra.mxu0 0
      %1479 = vmatprep.subr.bf16.mxu0 0
      %1480 = vmatpush1.bf16.msra.mxu0 0
      %1481 = vmatprep.subr.bf16.mxu0 0
      %1482 = vmatpush1.bf16.msra.mxu0 0
      %1483 = vmatprep.subr.bf16.mxu0 0
      %1484 = vmatpush1.bf16.msra.mxu0 0
      %1485 = vmatprep.subr.bf16.mxu0 0
      %1486 = vmatpush1.bf16.msra.mxu0 0
      %1487 = vmatprep.mubr.bf16.mxu0 0
      %1488 = vmatmul.mubr.bf16.gmra.mrb[0].mxu0 %v1144
      %v1489 = vpop.f32.mrb[0].mxu0
      %v1490 = vadd.f32 %v1393, %v1489
      %v1491 = vpop.f32.mrb[0].mxu0
      %v1492 = vpop.f32.mrb[0].mxu0
      %v1493 = vadd.f32 %v1396, %v1492
      %v1494 = vpop.f32.mrb[0].mxu0
      %1495 = vmatprep.mubr.bf16.mxu0 0
      %1496 = vmatmul.mubr.bf16.gmra.mrb[0].mxu0 %v1147
      %v1497 = vpop.f32.mrb[0].mxu0
      %v1498 = vadd.f32 %v1401, %v1497
      %v1499 = vpop.f32.mrb[0].mxu0
      %v1500 = vpop.f32.mrb[0].mxu0
      %v1501 = vadd.f32 %v1404, %v1500
      %v1502 = vpop.f32.mrb[0].mxu0
      %1503 = vmatprep.mubr.bf16.mxu0 0
      %1504 = vmatmul.mubr.bf16.gmra.mrb[0].mxu0 %v1150
      %v1505 = vpop.f32.mrb[0].mxu0
      %v1506 = vadd.f32 %v1409, %v1505
      %v1507 = vpop.f32.mrb[0].mxu0
      %v1508 = vpop.f32.mrb[0].mxu0
      %v1509 = vadd.f32 %v1412, %v1508
      %v1510 = vpop.f32.mrb[0].mxu0
      %1511 = vmatprep.mubr.bf16.mxu0 0
      %1512 = vmatmul.mubr.bf16.gmra.mrb[0].mxu0 %v1153
      %v1513 = vpop.f32.mrb[0].mxu0
      %v1514 = vadd.f32 %v1417, %v1513
      %v1515 = vpop.f32.mrb[0].mxu0
      %v1516 = vpop.f32.mrb[0].mxu0
      %v1517 = vadd.f32 %v1420, %v1516
      %v1518 = vpop.f32.mrb[0].mxu0
      %1519 = vmatprep.mubr.bf16.mxu0 0
      %1520 = vmatmul.mubr.bf16.gmra.mrb[0].mxu0 %v1156
      %v1521 = vpop.f32.mrb[0].mxu0
      %v1522 = vadd.f32 %v1425, %v1521
      %v1523 = vpop.f32.mrb[0].mxu0
      %v1524 = vpop.f32.mrb[0].mxu0
      %v1525 = vadd.f32 %v1428, %v1524
      %v1526 = vpop.f32.mrb[0].mxu0
      %1527 = vmatprep.mubr.bf16.mxu0 0
      %1528 = vmatmul.mubr.bf16.gmra.mrb[0].mxu0 %v1159
      %v1529 = vpop.f32.mrb[0].mxu0
      %v1530 = vadd.f32 %v1433, %v1529
      %v1531 = vpop.f32.mrb[0].mxu0
      %v1532 = vpop.f32.mrb[0].mxu0
      %v1533 = vadd.f32 %v1436, %v1532
      %v1534 = vpop.f32.mrb[0].mxu0
      %1535 = vmatprep.mubr.bf16.mxu0 0
      %1536 = vmatmul.mubr.bf16.gmra.mrb[0].mxu0 %v1162
      %v1537 = vpop.f32.mrb[0].mxu0
      %v1538 = vadd.f32 %v1441, %v1537
      %v1539 = vpop.f32.mrb[0].mxu0
      %v1540 = vpop.f32.mrb[0].mxu0
      %v1541 = vadd.f32 %v1444, %v1540
      %v1542 = vpop.f32.mrb[0].mxu0
      %1543 = vmatprep.mubr.bf16.mxu0 0
      %1544 = vmatmul.mubr.bf16.gmra.mrb[0].mxu0 %v1165
      %v1545 = vpop.f32.mrb[0].mxu0
      %v1546 = vadd.f32 %v1449, %v1545
      %v1547 = vpop.f32.mrb[0].mxu0
      %v1548 = vpop.f32.mrb[0].mxu0
      %v1549 = vadd.f32 %v1452, %v1548
      %v1550 = vpop.f32.mrb[0].mxu0
      %1551 = vdwg.mxu0
      %v1552 = vadd.f32 %v1126, %v1490
      %v1553 = vadd.f32 %v1127, %v1493
      %v1554 = vadd.f32 %v1128, %v1498
      %v1555 = vadd.f32 %v1129, %v1501
      %v1556 = vadd.f32 %v1130, %v1506
      %v1557 = vadd.f32 %v1131, %v1509
      %v1558 = vadd.f32 %v1132, %v1514
      %v1559 = vadd.f32 %v1133, %v1517
      %v1560 = vadd.f32 %v1134, %v1522
      %v1561 = vadd.f32 %v1135, %v1525
      %v1562 = vadd.f32 %v1136, %v1530
      %v1563 = vadd.f32 %v1137, %v1533
      %v1564 = vadd.f32 %v1138, %v1538
      %v1565 = vadd.f32 %v1139, %v1541
      %v1566 = vadd.f32 %v1140, %v1546
      %v1567 = vadd.f32 %v1141, %v1549
      %v1568 = vmax.f32 %v1552, 0.0
      %v1569 = vmax.f32 %v1553, 0.0
      %v1570 = vmax.f32 %v1554, 0.0
      %v1571 = vmax.f32 %v1555, 0.0
      %v1572 = vmax.f32 %v1556, 0.0
      %v1573 = vmax.f32 %v1557, 0.0
      %v1574 = vmax.f32 %v1558, 0.0
      %v1575 = vmax.f32 %v1559, 0.0
      %v1576 = vmax.f32 %v1560, 0.0
      %v1577 = vmax.f32 %v1561, 0.0
      %v1578 = vmax.f32 %v1562, 0.0
      %v1579 = vmax.f32 %v1563, 0.0
      %v1580 = vmax.f32 %v1564, 0.0
      %v1581 = vmax.f32 %v1565, 0.0
      %v1582 = vmax.f32 %v1566, 0.0
      %v1583 = vmax.f32 %v1567, 0.0
      %1584 = vst [vmem:[%s226] sm:$0xff] %v1568
      %1585 = vst [vmem:[%s226 + $0x8] sm:$0xff] %v1569
      %1586 = vst [vmem:[%s226 + $0x10] sm:$0xff] %v1570
      %1587 = vst [vmem:[%s226 + $0x18] sm:$0xff] %v1571
      %1588 = vst [vmem:[%s226 + $0x20] sm:$0xff] %v1572
      %1589 = vst [vmem:[%s226 + $0x28] sm:$0xff] %v1573
      %1590 = vst [vmem:[%s226 + $0x30] sm:$0xff] %v1574
      %1591 = vst [vmem:[%s226 + $0x38] sm:$0xff] %v1575
      %1592 = vst [vmem:[%s226 + $0x40] sm:$0xff] %v1576
      %1593 = vst [vmem:[%s226 + $0x48] sm:$0xff] %v1577
      %1594 = vst [vmem:[%s226 + $0x50] sm:$0xff] %v1578
      %1595 = vst [vmem:[%s226 + $0x58] sm:$0xff] %v1579
      %1596 = vst [vmem:[%s226 + $0x60] sm:$0xff] %v1580
      %1597 = vst [vmem:[%s226 + $0x68] sm:$0xff] %v1581
      %1598 = vst [vmem:[%s226 + $0x70] sm:$0xff] %v1582
      %1599 = vst [vmem:[%s226 + $0x78] sm:$0xff] %v1583
      %s1600 = smul.u32 16, %s16
      %p1601 = scmp.lt.s32.totalorder %s1600, 31
      %s1602 = scalar_select %p1601, %s1600, 31
      %s1603 = smul.addr %s1602, 8
      %s1604 = scalar_lea.vmem %s5, %s1603
      // Predicated region
      $region41: #{double_conv_forward.1} parent=39 // pred_check
        %p1605 = pneg %p144
      $region42: #{double_conv_forward.1} parent=39 // pred_check_branch
        %1607 = sbr.rel (%p1605) target = $region44
      $region43: #{double_conv_forward.1} parent=39 // pred_region
        %s1608 = smul.u32 16, %s16
      $region44: #{double_conv_forward.1} parent=39 // pred_fallthru
        _
    $region40: #{double_conv_forward.1} parent=5 // pred_fallthru
      _
    %p1609 = scmp.le.s32.totalorder 2, %s11
    // Predicated region
    $region45: #{double_conv_forward.1} parent=5 // pred_check
      %p1610 = pneg %p1609
    $region46: #{double_conv_forward.1} parent=5 // pred_check_branch
      %1612 = sbr.rel (%p1610) target = $region48
    $region47: #{double_conv_forward.1} parent=5 // pred_region
      %s1613 = ssub.s32 %s11, 2
      // Predicated region
      $region49: #{double_conv_forward.1} parent=47 // pred_check
        %p1614 = pneg %p150
      $region50: #{double_conv_forward.1} parent=47 // pred_check_branch
        %1616 = sbr.rel (%p1614) target = $region52
      $region51: #{double_conv_forward.1} parent=47 // pred_region
        %s1617 = smul.u32 16, %s17
        %p1618 = scmp.lt.s32.totalorder %s1617, 31
        %s1619 = scalar_select %p1618, %s1617, 31
        %s1620 = smul.addr %s1619, 8
        %s1621 = scalar_lea.vmem %s5, %s1620
      $region52: #{double_conv_forward.1} parent=47 // pred_fallthru
        _
    $region48: #{double_conv_forward.1} parent=5 // pred_fallthru
      _
  $region6: #{double_conv_forward.1} parent=0 // loop_footer
    %s15 = sadd.s32 1, %s11
  $region7: #{double_conv_forward.1} parent=0 // loop_footer_branch
    %10 = sbr.rel target = $region3
  $region8: #{double_conv_forward.1} parent=0 // loop_exit
    _

</llo_original>
